<compile_context>
chip_gen: v7x
topology: tpu7x:2x2x1
jax: 0.10.0
libtpu: 0.0.40
codegen_flags: <defaults>
</compile_context>

<pallas_src>
from functools import partial

import numpy as np
import jax
import jax.numpy as jnp
from jax.experimental import pallas as pl
from jax.experimental.pallas import tpu as pltpu

_MIN_STD = 1e-3
_STATE_LOWER = -5.0   # transition_model_ens.state_limit_lower
_STATE_UPPER = 5.0    # transition_model_ens.state_limit_upper
_LOG_2PI = float(np.log(2.0 * np.pi))


# ---------------------------------------------------------------------------
# Fused per-ensemble-member loss kernel
# ---------------------------------------------------------------------------
def _make_fused_kernel(T, msl, S, A, t_weights, r_weights):
    """Build the fused kernel for one ensemble member (grid=(E,))."""
    t_w = tuple(float(w) for w in t_weights)      # len msl
    r_w = tuple(float(w) for w in r_weights)      # len msl + 1
    Din = S + A

    def kernel(obs_ref, act_ref, rew_ref, noise_ref,
               wt_ref, bt_ref, wr_ref, br_ref, out_ref):
        # obs_ref   : (1, B, T+1, S)     per-member observations
        # act_ref   : (msl, B, T, A)     shifted actions  act_sh[i, :, j] = a_{j+i}
        # rew_ref   : (msl, B, T, 1)     shifted rewards  rew_sh[i, :, j] = r_{j+i}
        # noise_ref : (1, msl, B, T, S)  reparametrization noise per rollout step
        # wt_ref    : (1, 2S, Din)       packed transition weights [Wm|Ws]^T
        # bt_ref    : (1, 1, 2S)         packed transition biases  [bm|bs]
        # wr_ref    : (1, 2, Din)        packed reward weights
        # br_ref    : (1, 1, 2)          packed reward biases
        # out_ref   : (1, B, 1)          per-member loss
        B = obs_ref.shape[1]
        obs = obs_ref[0]                                   # (B, T+1, S) f32
        bt = bt_ref[...]                                   # (1, 1, 2S)
        br = br_ref[...]                                   # (1, 1, 2)

        # Weights: single bf16 cast + single batch-broadcast (hoisted out of loop).
        wt_b = jnp.broadcast_to(wt_ref[0].astype(jnp.bfloat16)[None], (B, 2 * S, Din))
        wr_b = jnp.broadcast_to(wr_ref[0].astype(jnp.bfloat16)[None], (B, 2, Din))

        def gauss_head(x, w_b, b):
            # x: (B, T, Din) f32 ; w_b: (B, 2*Dout, Din) bf16 ; b: (1, 1, 2*Dout)
            h = jnp.einsum("btd,bfd->btf", x.astype(jnp.bfloat16), w_b,
                           preferred_element_type=jnp.float32) + b
            d = h.shape[-1] // 2
            mean = h[..., :d]
            pre = h[..., d:]
            # numerically stable softplus (f32 element-wise path)
            std = jnp.maximum(pre, 0.0) + jnp.log1p(jnp.exp(-jnp.abs(pre))) + _MIN_STD
            return mean, std

        def nll(mean, std, tgt):
            # -sum_{time, feat} log N(tgt | mean, std)  ->  (B, 1)
            inv_s = pl.reciprocal(std, approx=True)
            z = (tgt - mean) * inv_s
            lp = -0.5 * z * z - jnp.log(std) - 0.5 * _LOG_2PI
            return -jnp.sum(jnp.sum(lp, axis=-1, keepdims=True), axis=1)

        acc = jnp.zeros((B, 1), jnp.float32)

        # -------- reward chunk 0: R(obs_{1..T}, a_{0..T-1}) vs r_{0..T-1} --------
        x0 = jnp.concatenate([obs[:, 1:, :], act_ref[0]], axis=-1)     # (B, T, Din)
        rm0, rs0 = gauss_head(x0, wr_b, br)                            # (B, T, 1)
        acc = acc + r_w[0] * nll(rm0, rs0, rew_ref[0])

        # -------- multi-step rollout (msl is small & static -> unrolled) --------
        state = obs[:, :T, :]                                          # (B, T, S)
        for i in range(msl):
            Li = T - i                                                 # valid horizon
            act_i = act_ref[i]                                         # (B, T, A)
            x = jnp.concatenate([state, act_i], axis=-1)               # (B, T, Din)
            mean, std = gauss_head(x, wt_b, bt)                        # (B, T, S)

            # transition NLL vs obs_{j+i+1}, weight t_weights[i] (valid j < T-i)
            tgt = obs[:, i + 1:i + 1 + Li, :]
            acc = acc + t_w[i] * nll(mean[:, :Li], std[:, :Li], tgt)

            # clipped reparametrized sample -> next rollout state
            samp = jnp.clip(mean + std * noise_ref[0, i], _STATE_LOWER, _STATE_UPPER)

            # reward chunk i+1: R(samp_j, a_{j+i}) vs r_{j+i}, weight r_weights[i+1]
            xr = jnp.concatenate([samp, act_i], axis=-1)
            rm, rs = gauss_head(xr, wr_b, br)
            acc = acc + r_w[i + 1] * nll(rm[:, :Li], rs[:, :Li], rew_ref[i][:, :Li])

            state = samp

        out_ref[0] = acc

    return kernel


# ---------------------------------------------------------------------------
# Wrapper glue (single jit around one pallas_call)
# ---------------------------------------------------------------------------
def _shifted_stack(x, msl):
    """x: [B, T, D] -> [msl, B, T, D] with out[i, :, j] = x[:, j+i] (zero pad past end)."""
    B, T, D = x.shape
    chunks = [x]
    for i in range(1, msl):
        chunks.append(jnp.concatenate(
            [x[:, i:], jnp.zeros((B, i, D), x.dtype)], axis=1))
    return jnp.stack(chunks, axis=0)


@partial(jax.jit, static_argnames=("T", "msl", "t_weights", "r_weights"))
def mdp_loss_forward(obs, act, rew, sample_key, wt_p, bt_p, wr_p, br_p,
                     *, T, msl, t_weights, r_weights):
    B, Tp1, E, S = obs.shape
    A = act.shape[-1]
    Din = S + A

    obs_e = jnp.transpose(obs, (2, 0, 1, 3))                    # [E, B, T+1, S]
    act_sh = _shifted_stack(act, msl)                           # [msl, B, T, A]
    rew_sh = _shifted_stack(rew, msl)                           # [msl, B, T, 1]
    noise = jax.random.normal(sample_key, (E, msl, B, T, S), jnp.float32)

    kernel = _make_fused_kernel(T, msl, S, A, t_weights, r_weights)

    out = pl.pallas_call(
        kernel,
        grid=(E,),
        in_specs=[
            pl.BlockSpec((1, B, Tp1, S), lambda e: (e, 0, 0, 0)),        # obs (per e)
            pl.BlockSpec((msl, B, T, A), lambda e: (0, 0, 0, 0)),        # shifted act
            pl.BlockSpec((msl, B, T, 1), lambda e: (0, 0, 0, 0)),        # shifted rew
            pl.BlockSpec((1, msl, B, T, S), lambda e: (e, 0, 0, 0, 0)),  # noise (per e)
            pl.BlockSpec((1, 2 * S, Din), lambda e: (e, 0, 0)),          # packed Wt
            pl.BlockSpec((1, 1, 2 * S), lambda e: (e, 0, 0)),            # packed bt
            pl.BlockSpec((1, 2, Din), lambda e: (e, 0, 0)),              # packed Wr
            pl.BlockSpec((1, 1, 2), lambda e: (e, 0, 0)),                # packed br
        ],
        out_specs=pl.BlockSpec((1, B, 1), lambda e: (e, 0, 0)),
        out_shape=jax.ShapeDtypeStruct((E, B, 1), jnp.float32),
        compiler_params=pltpu.CompilerParams(
            dimension_semantics=("parallel",)),                  # E shards across TCs on v7x
    )(obs_e, act_sh, rew_sh, noise, wt_p, bt_p, wr_p, br_p)

    return jnp.transpose(out[:, :, 0], (1, 0))                   # [B, E]


# ---------------------------------------------------------------------------
# Synthetic ensemble model parameters (deterministic, in-script)
# ---------------------------------------------------------------------------
def init_ens_params(key, E, Din, Dout):
    k1, k2 = jax.random.split(key)
    scale = 1.0 / np.sqrt(Din)
    return dict(
        wm=jax.random.normal(k1, (E, Din, Dout), jnp.float32) * scale,
        bm=jnp.zeros((E, Dout), jnp.float32),
        ws=jax.random.normal(k2, (E, Din, Dout), jnp.float32) * scale,
        bs=jnp.full((E, Dout), -1.0, jnp.float32),
    )


class MDPLossComputerPallas:
    """Mirrors _MDPLossComputer.forward (loss only; no optimizer / backward)."""

    def __init__(self, t_weights, r_weights, time_steps_per_episode, E, S, A, key):
        assert len(t_weights) + 1 == len(r_weights), (
            "Multi-step prediction weights of the reward model must be one "
            "step longer than of the transition model.")
        self.T = int(time_steps_per_episode)
        self.msl = len(t_weights)
        self.t_weights = tuple(float(w) for w in t_weights)
        self.r_weights = tuple(float(w) for w in r_weights)
        self.E, self.S, self.A = E, S, A

        kt, kr = jax.random.split(key)
        tp = init_ens_params(kt, E, S + A, S)    # transition model ensemble
        rp = init_ens_params(kr, E, S + A, 1)    # reward model ensemble

        # Pack mean|std heads into one matmul each; store transposed [E, 2*Dout, Din]
        # so the kernel contracts last-dim against last-dim ('btd,bfd->btf').
        self.wt_p = jnp.transpose(jnp.concatenate([tp["wm"], tp["ws"]], axis=-1), (0, 2, 1))
        self.bt_p = jnp.concatenate([tp["bm"], tp["bs"]], axis=-1)[:, None, :]
        self.wr_p = jnp.transpose(jnp.concatenate([rp["wm"], rp["ws"]], axis=-1), (0, 2, 1))
        self.br_p = jnp.concatenate([rp["bm"], rp["bs"]], axis=-1)[:, None, :]

    def __call__(self, obs, act, rew, sample_key):
        return mdp_loss_forward(
            obs, act, rew, sample_key,
            self.wt_p, self.bt_p, self.wr_p, self.br_p,
            T=self.T, msl=self.msl,
            t_weights=self.t_weights, r_weights=self.r_weights)


if __name__ == "__main__":
    B, T, E, S, A = 2, 8, 4, 8, 4
    t_weights = [1.0, 0.5]            # multi_step_prediction_weights_transition
    r_weights = [1.0, 0.5, 0.25]      # multi_step_prediction_weights_reward

    key = jax.random.PRNGKey(0)
    k_obs, k_act, k_rew, k_par, k_samp = jax.random.split(key, 5)

    obs = jax.random.normal(k_obs, (B, T + 1, E, S), jnp.float32)
    act = jax.random.normal(k_act, (B, T, A), jnp.float32)
    rew = jax.random.normal(k_rew, (B, T, 1), jnp.float32)

    loss_computer = MDPLossComputerPallas(t_weights, r_weights, T, E, S, A, k_par)
    loss = loss_computer(obs, act, rew, k_samp)   # [B, E]
    jax.block_until_ready(loss)
    assert loss.shape == (B, E) and bool(jnp.all(jnp.isfinite(loss)))
    print("KERNEL_OK")
</pallas_src>

<mosaic_0001>
module attributes {stable_mosaic.version = 11 : i64} {
  func.func @kernel(%arg0: i32, %arg1: memref<1x2x9x8xf32, #tpu.memory_space<vmem>>, %arg2: memref<2x2x8x4xf32, #tpu.memory_space<vmem>>, %arg3: memref<2x2x8x1xf32, #tpu.memory_space<vmem>>, %arg4: memref<1x2x2x8x8xf32, #tpu.memory_space<vmem>>, %arg5: memref<1x16x12xf32, #tpu.memory_space<vmem>>, %arg6: memref<1x1x16xf32, #tpu.memory_space<vmem>>, %arg7: memref<1x2x12xf32, #tpu.memory_space<vmem>>, %arg8: memref<1x1x2xf32, #tpu.memory_space<vmem>>, %arg9: memref<1x2x1xf32, #tpu.memory_space<vmem>>) attributes {dimension_semantics = [#tpu.dimension_semantics<parallel>], iteration_bounds = array<i64: 4>, scalar_prefetch = 0 : i64, scratch_operands = 0 : i64, tpu.core_type = #tpu.core_type<tc>, window_params = [{transform_indices = @transform_0, window_bounds = array<i64: 1, 2, 9, 8>}, {pipeline_mode = #tpu.pipeline_mode<synchronous>, transform_indices = @transform_1, window_bounds = array<i64: 2, 2, 8, 4>}, {pipeline_mode = #tpu.pipeline_mode<synchronous>, transform_indices = @transform_2, window_bounds = array<i64: 2, 2, 8, 1>}, {transform_indices = @transform_3, window_bounds = array<i64: 1, 2, 2, 8, 8>}, {transform_indices = @transform_4, window_bounds = array<i64: 1, 16, 12>}, {transform_indices = @transform_5, window_bounds = array<i64: 1, 1, 16>}, {transform_indices = @transform_6, window_bounds = array<i64: 1, 2, 12>}, {transform_indices = @transform_7, window_bounds = array<i64: 1, 1, 2>}, {transform_indices = @transform_8, window_bounds = array<i64: 1, 2, 1>}]} {
    %c0 = arith.constant 0 : index
    %c0_0 = arith.constant 0 : index
    %c0_1 = arith.constant 0 : index
    %c0_2 = arith.constant 0 : index
    %0 = vector.load %arg1[%c0, %c0_0, %c0_1, %c0_2] : memref<1x2x9x8xf32, #tpu.memory_space<vmem>>, vector<1x2x9x8xf32>
    %1 = vector.shape_cast %0 : vector<1x2x9x8xf32> to vector<2x9x8xf32>
    %c0_3 = arith.constant 0 : index
    %c0_4 = arith.constant 0 : index
    %c0_5 = arith.constant 0 : index
    %2 = vector.load %arg6[%c0_3, %c0_4, %c0_5] : memref<1x1x16xf32, #tpu.memory_space<vmem>>, vector<1x1x16xf32>
    %c0_6 = arith.constant 0 : index
    %c0_7 = arith.constant 0 : index
    %c0_8 = arith.constant 0 : index
    %3 = vector.load %arg8[%c0_6, %c0_7, %c0_8] : memref<1x1x2xf32, #tpu.memory_space<vmem>>, vector<1x1x2xf32>
    %c0_9 = arith.constant 0 : index
    %c0_10 = arith.constant 0 : index
    %c0_11 = arith.constant 0 : index
    %4 = vector.load %arg5[%c0_9, %c0_10, %c0_11] : memref<1x16x12xf32, #tpu.memory_space<vmem>>, vector<1x16x12xf32>
    %5 = vector.shape_cast %4 : vector<1x16x12xf32> to vector<16x12xf32>
    %6 = arith.truncf %5 : vector<16x12xf32> to vector<16x12xbf16>
    %7 = vector.shape_cast %6 : vector<16x12xbf16> to vector<1x16x12xbf16>
    %8 = vector.shape_cast %7 : vector<1x16x12xbf16> to vector<1x16x12xbf16>
    %9 = vector.broadcast %8 : vector<1x16x12xbf16> to vector<2x16x12xbf16>
    %c0_12 = arith.constant 0 : index
    %c0_13 = arith.constant 0 : index
    %c0_14 = arith.constant 0 : index
    %10 = vector.load %arg7[%c0_12, %c0_13, %c0_14] : memref<1x2x12xf32, #tpu.memory_space<vmem>>, vector<1x2x12xf32>
    %11 = vector.shape_cast %10 : vector<1x2x12xf32> to vector<2x12xf32>
    %12 = arith.truncf %11 : vector<2x12xf32> to vector<2x12xbf16>
    %13 = vector.shape_cast %12 : vector<2x12xbf16> to vector<1x2x12xbf16>
    %14 = vector.shape_cast %13 : vector<1x2x12xbf16> to vector<1x2x12xbf16>
    %15 = vector.broadcast %14 : vector<1x2x12xbf16> to vector<2x2x12xbf16>
    %cst = arith.constant 0.000000e+00 : f32
    %16 = vector.broadcast %cst : f32 to vector<2x1xf32>
    %17 = vector.extract_strided_slice %1 {offsets = [0, 1, 0], sizes = [2, 8, 8], strides = [1, 1, 1]} : vector<2x9x8xf32> to vector<2x8x8xf32>
    %c0_15 = arith.constant 0 : index
    %c0_16 = arith.constant 0 : index
    %c0_17 = arith.constant 0 : index
    %c0_18 = arith.constant 0 : index
    %18 = vector.load %arg2[%c0_15, %c0_16, %c0_17, %c0_18] : memref<2x2x8x4xf32, #tpu.memory_space<vmem>>, vector<1x2x8x4xf32>
    %19 = vector.shape_cast %18 : vector<1x2x8x4xf32> to vector<2x8x4xf32>
    %20 = tpu.concatenate %17, %19 in 2 : vector<2x8x8xf32>, vector<2x8x4xf32> -> vector<2x8x12xf32>
    %21 = arith.truncf %20 : vector<2x8x12xf32> to vector<2x8x12xbf16>
    "tpu.trace_start"() <{level = 10 : i32, message = "btd,bfd->btf"}> : () -> ()
    %cst_19 = arith.constant dense<0.000000e+00> : vector<2x8x2xf32>
    %22 = tpu.matmul %21, %15, %cst_19 {dimension_numbers = #tpu.dot_dimension_numbers<[2], [2], [1], [1], [0, 0, 0, 1, 1, 1], [0], [0]>} : vector<2x8x12xbf16>, vector<2x2x12xbf16>, vector<2x8x2xf32> -> vector<2x8x2xf32>
    "tpu.trace_stop"() : () -> ()
    %23 = vector.broadcast %3 : vector<1x1x2xf32> to vector<2x8x2xf32>
    %24 = arith.addf %22, %23 : vector<2x8x2xf32>
    %25 = vector.extract_strided_slice %24 {offsets = [0, 0, 0], sizes = [2, 8, 1], strides = [1, 1, 1]} : vector<2x8x2xf32> to vector<2x8x1xf32>
    %26 = vector.extract_strided_slice %24 {offsets = [0, 0, 1], sizes = [2, 8, 1], strides = [1, 1, 1]} : vector<2x8x2xf32> to vector<2x8x1xf32>
    %cst_20 = arith.constant 0.000000e+00 : f32
    %27 = vector.broadcast %cst_20 : f32 to vector<2x8x1xf32>
    %28 = arith.maximumf %26, %27 : vector<2x8x1xf32>
    %29 = math.absf %26 : vector<2x8x1xf32>
    %cst_21 = arith.constant 0.000000e+00 : f32
    %30 = vector.broadcast %cst_21 : f32 to vector<2x8x1xf32>
    %31 = arith.subf %30, %29 : vector<2x8x1xf32>
    %32 = math.exp %31 : vector<2x8x1xf32>
    %33 = math.log1p %32 : vector<2x8x1xf32>
    %34 = arith.addf %28, %33 : vector<2x8x1xf32>
    %cst_22 = arith.constant 1.000000e-03 : f32
    %35 = vector.broadcast %cst_22 : f32 to vector<2x8x1xf32>
    %36 = arith.addf %34, %35 : vector<2x8x1xf32>
    %c0_23 = arith.constant 0 : index
    %c0_24 = arith.constant 0 : index
    %c0_25 = arith.constant 0 : index
    %c0_26 = arith.constant 0 : index
    %37 = vector.load %arg3[%c0_23, %c0_24, %c0_25, %c0_26] : memref<2x2x8x1xf32, #tpu.memory_space<vmem>>, vector<1x2x8x1xf32>
    %38 = vector.shape_cast %37 : vector<1x2x8x1xf32> to vector<2x8x1xf32>
    %39 = tpu.reciprocal %36 {approx = true} : vector<2x8x1xf32> -> vector<2x8x1xf32>
    %40 = arith.subf %38, %25 : vector<2x8x1xf32>
    %41 = arith.mulf %40, %39 : vector<2x8x1xf32>
    %cst_27 = arith.constant -5.000000e-01 : f32
    %42 = vector.broadcast %cst_27 : f32 to vector<2x8x1xf32>
    %43 = arith.mulf %42, %41 : vector<2x8x1xf32>
    %44 = arith.mulf %43, %41 : vector<2x8x1xf32>
    %45 = math.log %36 : vector<2x8x1xf32>
    %46 = arith.subf %44, %45 : vector<2x8x1xf32>
    %cst_28 = arith.constant 0.918938517 : f32
    %47 = vector.broadcast %cst_28 : f32 to vector<2x8x1xf32>
    %48 = arith.subf %46, %47 : vector<2x8x1xf32>
    %cst_29 = arith.constant dense<0.000000e+00> : vector<2x8xf32>
    %49 = vector.multi_reduction <add>, %48, %cst_29 [2] : vector<2x8x1xf32> to vector<2x8xf32>
    %50 = vector.shape_cast %49 : vector<2x8xf32> to vector<2x8x1xf32>
    %cst_30 = arith.constant dense<0.000000e+00> : vector<2x1xf32>
    %51 = vector.multi_reduction <add>, %50, %cst_30 [1] : vector<2x8x1xf32> to vector<2x1xf32>
    %cst_31 = arith.constant 0.000000e+00 : f32
    %52 = vector.broadcast %cst_31 : f32 to vector<2x1xf32>
    %53 = arith.subf %52, %51 : vector<2x1xf32>
    %cst_32 = arith.constant 1.000000e+00 : f32
    %54 = vector.broadcast %cst_32 : f32 to vector<2x1xf32>
    %55 = arith.mulf %54, %53 : vector<2x1xf32>
    %56 = arith.addf %16, %55 : vector<2x1xf32>
    %57 = vector.extract_strided_slice %1 {offsets = [0, 0, 0], sizes = [2, 8, 8], strides = [1, 1, 1]} : vector<2x9x8xf32> to vector<2x8x8xf32>
    %c0_33 = arith.constant 0 : index
    %c0_34 = arith.constant 0 : index
    %c0_35 = arith.constant 0 : index
    %c0_36 = arith.constant 0 : index
    %58 = vector.load %arg2[%c0_33, %c0_34, %c0_35, %c0_36] : memref<2x2x8x4xf32, #tpu.memory_space<vmem>>, vector<1x2x8x4xf32>
    %59 = vector.shape_cast %58 : vector<1x2x8x4xf32> to vector<2x8x4xf32>
    %60 = tpu.concatenate %57, %59 in 2 : vector<2x8x8xf32>, vector<2x8x4xf32> -> vector<2x8x12xf32>
    %61 = arith.truncf %60 : vector<2x8x12xf32> to vector<2x8x12xbf16>
    "tpu.trace_start"() <{level = 10 : i32, message = "btd,bfd->btf"}> : () -> ()
    %cst_37 = arith.constant dense<0.000000e+00> : vector<2x8x16xf32>
    %62 = tpu.matmul %61, %9, %cst_37 {dimension_numbers = #tpu.dot_dimension_numbers<[2], [2], [1], [1], [0, 0, 0, 1, 1, 1], [0], [0]>} : vector<2x8x12xbf16>, vector<2x16x12xbf16>, vector<2x8x16xf32> -> vector<2x8x16xf32>
    "tpu.trace_stop"() : () -> ()
    %63 = vector.broadcast %2 : vector<1x1x16xf32> to vector<2x8x16xf32>
    %64 = arith.addf %62, %63 : vector<2x8x16xf32>
    %65 = vector.extract_strided_slice %64 {offsets = [0, 0, 0], sizes = [2, 8, 8], strides = [1, 1, 1]} : vector<2x8x16xf32> to vector<2x8x8xf32>
    %66 = vector.extract_strided_slice %64 {offsets = [0, 0, 8], sizes = [2, 8, 8], strides = [1, 1, 1]} : vector<2x8x16xf32> to vector<2x8x8xf32>
    %cst_38 = arith.constant 0.000000e+00 : f32
    %67 = vector.broadcast %cst_38 : f32 to vector<2x8x8xf32>
    %68 = arith.maximumf %66, %67 : vector<2x8x8xf32>
    %69 = math.absf %66 : vector<2x8x8xf32>
    %cst_39 = arith.constant 0.000000e+00 : f32
    %70 = vector.broadcast %cst_39 : f32 to vector<2x8x8xf32>
    %71 = arith.subf %70, %69 : vector<2x8x8xf32>
    %72 = math.exp %71 : vector<2x8x8xf32>
    %73 = math.log1p %72 : vector<2x8x8xf32>
    %74 = arith.addf %68, %73 : vector<2x8x8xf32>
    %cst_40 = arith.constant 1.000000e-03 : f32
    %75 = vector.broadcast %cst_40 : f32 to vector<2x8x8xf32>
    %76 = arith.addf %74, %75 : vector<2x8x8xf32>
    %77 = vector.extract_strided_slice %1 {offsets = [0, 1, 0], sizes = [2, 8, 8], strides = [1, 1, 1]} : vector<2x9x8xf32> to vector<2x8x8xf32>
    %78 = tpu.reciprocal %76 {approx = true} : vector<2x8x8xf32> -> vector<2x8x8xf32>
    %79 = arith.subf %77, %65 : vector<2x8x8xf32>
    %80 = arith.mulf %79, %78 : vector<2x8x8xf32>
    %cst_41 = arith.constant -5.000000e-01 : f32
    %81 = vector.broadcast %cst_41 : f32 to vector<2x8x8xf32>
    %82 = arith.mulf %81, %80 : vector<2x8x8xf32>
    %83 = arith.mulf %82, %80 : vector<2x8x8xf32>
    %84 = math.log %76 : vector<2x8x8xf32>
    %85 = arith.subf %83, %84 : vector<2x8x8xf32>
    %cst_42 = arith.constant 0.918938517 : f32
    %86 = vector.broadcast %cst_42 : f32 to vector<2x8x8xf32>
    %87 = arith.subf %85, %86 : vector<2x8x8xf32>
    %cst_43 = arith.constant dense<0.000000e+00> : vector<2x8xf32>
    %88 = vector.multi_reduction <add>, %87, %cst_43 [2] : vector<2x8x8xf32> to vector<2x8xf32>
    %89 = vector.shape_cast %88 : vector<2x8xf32> to vector<2x8x1xf32>
    %cst_44 = arith.constant dense<0.000000e+00> : vector<2x1xf32>
    %90 = vector.multi_reduction <add>, %89, %cst_44 [1] : vector<2x8x1xf32> to vector<2x1xf32>
    %cst_45 = arith.constant 0.000000e+00 : f32
    %91 = vector.broadcast %cst_45 : f32 to vector<2x1xf32>
    %92 = arith.subf %91, %90 : vector<2x1xf32>
    %cst_46 = arith.constant 1.000000e+00 : f32
    %93 = vector.broadcast %cst_46 : f32 to vector<2x1xf32>
    %94 = arith.mulf %93, %92 : vector<2x1xf32>
    %95 = arith.addf %56, %94 : vector<2x1xf32>
    %c0_47 = arith.constant 0 : index
    %c0_48 = arith.constant 0 : index
    %c0_49 = arith.constant 0 : index
    %c0_50 = arith.constant 0 : index
    %c0_51 = arith.constant 0 : index
    %96 = vector.load %arg4[%c0_47, %c0_48, %c0_49, %c0_50, %c0_51] : memref<1x2x2x8x8xf32, #tpu.memory_space<vmem>>, vector<1x1x2x8x8xf32>
    %97 = vector.shape_cast %96 : vector<1x1x2x8x8xf32> to vector<2x8x8xf32>
    %98 = arith.mulf %76, %97 : vector<2x8x8xf32>
    %99 = arith.addf %65, %98 : vector<2x8x8xf32>
    %cst_52 = arith.constant -5.000000e+00 : f32
    %cst_53 = arith.constant 5.000000e+00 : f32
    %100 = vector.broadcast %cst_52 : f32 to vector<2x8x8xf32>
    %101 = arith.maximumf %100, %99 : vector<2x8x8xf32>
    %102 = vector.broadcast %cst_53 : f32 to vector<2x8x8xf32>
    %103 = arith.minimumf %102, %101 : vector<2x8x8xf32>
    %104 = tpu.concatenate %103, %59 in 2 : vector<2x8x8xf32>, vector<2x8x4xf32> -> vector<2x8x12xf32>
    %105 = arith.truncf %104 : vector<2x8x12xf32> to vector<2x8x12xbf16>
    "tpu.trace_start"() <{level = 10 : i32, message = "btd,bfd->btf"}> : () -> ()
    %cst_54 = arith.constant dense<0.000000e+00> : vector<2x8x2xf32>
    %106 = tpu.matmul %105, %15, %cst_54 {dimension_numbers = #tpu.dot_dimension_numbers<[2], [2], [1], [1], [0, 0, 0, 1, 1, 1], [0], [0]>} : vector<2x8x12xbf16>, vector<2x2x12xbf16>, vector<2x8x2xf32> -> vector<2x8x2xf32>
    "tpu.trace_stop"() : () -> ()
    %107 = vector.broadcast %3 : vector<1x1x2xf32> to vector<2x8x2xf32>
    %108 = arith.addf %106, %107 : vector<2x8x2xf32>
    %109 = vector.extract_strided_slice %108 {offsets = [0, 0, 0], sizes = [2, 8, 1], strides = [1, 1, 1]} : vector<2x8x2xf32> to vector<2x8x1xf32>
    %110 = vector.extract_strided_slice %108 {offsets = [0, 0, 1], sizes = [2, 8, 1], strides = [1, 1, 1]} : vector<2x8x2xf32> to vector<2x8x1xf32>
    %cst_55 = arith.constant 0.000000e+00 : f32
    %111 = vector.broadcast %cst_55 : f32 to vector<2x8x1xf32>
    %112 = arith.maximumf %110, %111 : vector<2x8x1xf32>
    %113 = math.absf %110 : vector<2x8x1xf32>
    %cst_56 = arith.constant 0.000000e+00 : f32
    %114 = vector.broadcast %cst_56 : f32 to vector<2x8x1xf32>
    %115 = arith.subf %114, %113 : vector<2x8x1xf32>
    %116 = math.exp %115 : vector<2x8x1xf32>
    %117 = math.log1p %116 : vector<2x8x1xf32>
    %118 = arith.addf %112, %117 : vector<2x8x1xf32>
    %cst_57 = arith.constant 1.000000e-03 : f32
    %119 = vector.broadcast %cst_57 : f32 to vector<2x8x1xf32>
    %120 = arith.addf %118, %119 : vector<2x8x1xf32>
    %c0_58 = arith.constant 0 : index
    %c0_59 = arith.constant 0 : index
    %c0_60 = arith.constant 0 : index
    %c0_61 = arith.constant 0 : index
    %121 = vector.load %arg3[%c0_58, %c0_59, %c0_60, %c0_61] : memref<2x2x8x1xf32, #tpu.memory_space<vmem>>, vector<1x2x8x1xf32>
    %122 = vector.shape_cast %121 : vector<1x2x8x1xf32> to vector<2x8x1xf32>
    %123 = tpu.reciprocal %120 {approx = true} : vector<2x8x1xf32> -> vector<2x8x1xf32>
    %124 = arith.subf %122, %109 : vector<2x8x1xf32>
    %125 = arith.mulf %124, %123 : vector<2x8x1xf32>
    %cst_62 = arith.constant -5.000000e-01 : f32
    %126 = vector.broadcast %cst_62 : f32 to vector<2x8x1xf32>
    %127 = arith.mulf %126, %125 : vector<2x8x1xf32>
    %128 = arith.mulf %127, %125 : vector<2x8x1xf32>
    %129 = math.log %120 : vector<2x8x1xf32>
    %130 = arith.subf %128, %129 : vector<2x8x1xf32>
    %cst_63 = arith.constant 0.918938517 : f32
    %131 = vector.broadcast %cst_63 : f32 to vector<2x8x1xf32>
    %132 = arith.subf %130, %131 : vector<2x8x1xf32>
    %cst_64 = arith.constant dense<0.000000e+00> : vector<2x8xf32>
    %133 = vector.multi_reduction <add>, %132, %cst_64 [2] : vector<2x8x1xf32> to vector<2x8xf32>
    %134 = vector.shape_cast %133 : vector<2x8xf32> to vector<2x8x1xf32>
    %cst_65 = arith.constant dense<0.000000e+00> : vector<2x1xf32>
    %135 = vector.multi_reduction <add>, %134, %cst_65 [1] : vector<2x8x1xf32> to vector<2x1xf32>
    %cst_66 = arith.constant 0.000000e+00 : f32
    %136 = vector.broadcast %cst_66 : f32 to vector<2x1xf32>
    %137 = arith.subf %136, %135 : vector<2x1xf32>
    %cst_67 = arith.constant 5.000000e-01 : f32
    %138 = vector.broadcast %cst_67 : f32 to vector<2x1xf32>
    %139 = arith.mulf %138, %137 : vector<2x1xf32>
    %140 = arith.addf %95, %139 : vector<2x1xf32>
    %c1 = arith.constant 1 : index
    %c0_68 = arith.constant 0 : index
    %c0_69 = arith.constant 0 : index
    %c0_70 = arith.constant 0 : index
    %141 = vector.load %arg2[%c1, %c0_68, %c0_69, %c0_70] : memref<2x2x8x4xf32, #tpu.memory_space<vmem>>, vector<1x2x8x4xf32>
    %142 = vector.shape_cast %141 : vector<1x2x8x4xf32> to vector<2x8x4xf32>
    %143 = tpu.concatenate %103, %142 in 2 : vector<2x8x8xf32>, vector<2x8x4xf32> -> vector<2x8x12xf32>
    %144 = arith.truncf %143 : vector<2x8x12xf32> to vector<2x8x12xbf16>
    "tpu.trace_start"() <{level = 10 : i32, message = "btd,bfd->btf"}> : () -> ()
    %cst_71 = arith.constant dense<0.000000e+00> : vector<2x8x16xf32>
    %145 = tpu.matmul %144, %9, %cst_71 {dimension_numbers = #tpu.dot_dimension_numbers<[2], [2], [1], [1], [0, 0, 0, 1, 1, 1], [0], [0]>} : vector<2x8x12xbf16>, vector<2x16x12xbf16>, vector<2x8x16xf32> -> vector<2x8x16xf32>
    "tpu.trace_stop"() : () -> ()
    %146 = vector.broadcast %2 : vector<1x1x16xf32> to vector<2x8x16xf32>
    %147 = arith.addf %145, %146 : vector<2x8x16xf32>
    %148 = vector.extract_strided_slice %147 {offsets = [0, 0, 0], sizes = [2, 8, 8], strides = [1, 1, 1]} : vector<2x8x16xf32> to vector<2x8x8xf32>
    %149 = vector.extract_strided_slice %147 {offsets = [0, 0, 8], sizes = [2, 8, 8], strides = [1, 1, 1]} : vector<2x8x16xf32> to vector<2x8x8xf32>
    %cst_72 = arith.constant 0.000000e+00 : f32
    %150 = vector.broadcast %cst_72 : f32 to vector<2x8x8xf32>
    %151 = arith.maximumf %149, %150 : vector<2x8x8xf32>
    %152 = math.absf %149 : vector<2x8x8xf32>
    %cst_73 = arith.constant 0.000000e+00 : f32
    %153 = vector.broadcast %cst_73 : f32 to vector<2x8x8xf32>
    %154 = arith.subf %153, %152 : vector<2x8x8xf32>
    %155 = math.exp %154 : vector<2x8x8xf32>
    %156 = math.log1p %155 : vector<2x8x8xf32>
    %157 = arith.addf %151, %156 : vector<2x8x8xf32>
    %cst_74 = arith.constant 1.000000e-03 : f32
    %158 = vector.broadcast %cst_74 : f32 to vector<2x8x8xf32>
    %159 = arith.addf %157, %158 : vector<2x8x8xf32>
    %160 = vector.extract_strided_slice %1 {offsets = [0, 2, 0], sizes = [2, 7, 8], strides = [1, 1, 1]} : vector<2x9x8xf32> to vector<2x7x8xf32>
    %161 = vector.extract_strided_slice %148 {offsets = [0, 0, 0], sizes = [2, 7, 8], strides = [1, 1, 1]} : vector<2x8x8xf32> to vector<2x7x8xf32>
    %162 = vector.extract_strided_slice %159 {offsets = [0, 0, 0], sizes = [2, 7, 8], strides = [1, 1, 1]} : vector<2x8x8xf32> to vector<2x7x8xf32>
    %163 = tpu.reciprocal %162 {approx = true} : vector<2x7x8xf32> -> vector<2x7x8xf32>
    %164 = arith.subf %160, %161 : vector<2x7x8xf32>
    %165 = arith.mulf %164, %163 : vector<2x7x8xf32>
    %cst_75 = arith.constant -5.000000e-01 : f32
    %166 = vector.broadcast %cst_75 : f32 to vector<2x7x8xf32>
    %167 = arith.mulf %166, %165 : vector<2x7x8xf32>
    %168 = arith.mulf %167, %165 : vector<2x7x8xf32>
    %169 = math.log %162 : vector<2x7x8xf32>
    %170 = arith.subf %168, %169 : vector<2x7x8xf32>
    %cst_76 = arith.constant 0.918938517 : f32
    %171 = vector.broadcast %cst_76 : f32 to vector<2x7x8xf32>
    %172 = arith.subf %170, %171 : vector<2x7x8xf32>
    %cst_77 = arith.constant dense<0.000000e+00> : vector<2x7xf32>
    %173 = vector.multi_reduction <add>, %172, %cst_77 [2] : vector<2x7x8xf32> to vector<2x7xf32>
    %174 = vector.shape_cast %173 : vector<2x7xf32> to vector<2x7x1xf32>
    %cst_78 = arith.constant dense<0.000000e+00> : vector<2x1xf32>
    %175 = vector.multi_reduction <add>, %174, %cst_78 [1] : vector<2x7x1xf32> to vector<2x1xf32>
    %cst_79 = arith.constant 0.000000e+00 : f32
    %176 = vector.broadcast %cst_79 : f32 to vector<2x1xf32>
    %177 = arith.subf %176, %175 : vector<2x1xf32>
    %cst_80 = arith.constant 5.000000e-01 : f32
    %178 = vector.broadcast %cst_80 : f32 to vector<2x1xf32>
    %179 = arith.mulf %178, %177 : vector<2x1xf32>
    %180 = arith.addf %140, %179 : vector<2x1xf32>
    %c0_81 = arith.constant 0 : index
    %c1_82 = arith.constant 1 : index
    %c0_83 = arith.constant 0 : index
    %c0_84 = arith.constant 0 : index
    %c0_85 = arith.constant 0 : index
    %181 = vector.load %arg4[%c0_81, %c1_82, %c0_83, %c0_84, %c0_85] : memref<1x2x2x8x8xf32, #tpu.memory_space<vmem>>, vector<1x1x2x8x8xf32>
    %182 = vector.shape_cast %181 : vector<1x1x2x8x8xf32> to vector<2x8x8xf32>
    %183 = arith.mulf %159, %182 : vector<2x8x8xf32>
    %184 = arith.addf %148, %183 : vector<2x8x8xf32>
    %cst_86 = arith.constant -5.000000e+00 : f32
    %cst_87 = arith.constant 5.000000e+00 : f32
    %185 = vector.broadcast %cst_86 : f32 to vector<2x8x8xf32>
    %186 = arith.maximumf %185, %184 : vector<2x8x8xf32>
    %187 = vector.broadcast %cst_87 : f32 to vector<2x8x8xf32>
    %188 = arith.minimumf %187, %186 : vector<2x8x8xf32>
    %189 = tpu.concatenate %188, %142 in 2 : vector<2x8x8xf32>, vector<2x8x4xf32> -> vector<2x8x12xf32>
    %190 = arith.truncf %189 : vector<2x8x12xf32> to vector<2x8x12xbf16>
    "tpu.trace_start"() <{level = 10 : i32, message = "btd,bfd->btf"}> : () -> ()
    %cst_88 = arith.constant dense<0.000000e+00> : vector<2x8x2xf32>
    %191 = tpu.matmul %190, %15, %cst_88 {dimension_numbers = #tpu.dot_dimension_numbers<[2], [2], [1], [1], [0, 0, 0, 1, 1, 1], [0], [0]>} : vector<2x8x12xbf16>, vector<2x2x12xbf16>, vector<2x8x2xf32> -> vector<2x8x2xf32>
    "tpu.trace_stop"() : () -> ()
    %192 = vector.broadcast %3 : vector<1x1x2xf32> to vector<2x8x2xf32>
    %193 = arith.addf %191, %192 : vector<2x8x2xf32>
    %194 = vector.extract_strided_slice %193 {offsets = [0, 0, 0], sizes = [2, 8, 1], strides = [1, 1, 1]} : vector<2x8x2xf32> to vector<2x8x1xf32>
    %195 = vector.extract_strided_slice %193 {offsets = [0, 0, 1], sizes = [2, 8, 1], strides = [1, 1, 1]} : vector<2x8x2xf32> to vector<2x8x1xf32>
    %cst_89 = arith.constant 0.000000e+00 : f32
    %196 = vector.broadcast %cst_89 : f32 to vector<2x8x1xf32>
    %197 = arith.maximumf %195, %196 : vector<2x8x1xf32>
    %198 = math.absf %195 : vector<2x8x1xf32>
    %cst_90 = arith.constant 0.000000e+00 : f32
    %199 = vector.broadcast %cst_90 : f32 to vector<2x8x1xf32>
    %200 = arith.subf %199, %198 : vector<2x8x1xf32>
    %201 = math.exp %200 : vector<2x8x1xf32>
    %202 = math.log1p %201 : vector<2x8x1xf32>
    %203 = arith.addf %197, %202 : vector<2x8x1xf32>
    %cst_91 = arith.constant 1.000000e-03 : f32
    %204 = vector.broadcast %cst_91 : f32 to vector<2x8x1xf32>
    %205 = arith.addf %203, %204 : vector<2x8x1xf32>
    %206 = vector.extract_strided_slice %194 {offsets = [0, 0, 0], sizes = [2, 7, 1], strides = [1, 1, 1]} : vector<2x8x1xf32> to vector<2x7x1xf32>
    %207 = vector.extract_strided_slice %205 {offsets = [0, 0, 0], sizes = [2, 7, 1], strides = [1, 1, 1]} : vector<2x8x1xf32> to vector<2x7x1xf32>
    %c1_92 = arith.constant 1 : index
    %c0_93 = arith.constant 0 : index
    %c0_94 = arith.constant 0 : index
    %c0_95 = arith.constant 0 : index
    %208 = vector.load %arg3[%c1_92, %c0_93, %c0_94, %c0_95] : memref<2x2x8x1xf32, #tpu.memory_space<vmem>>, vector<1x2x8x1xf32>
    %209 = vector.shape_cast %208 : vector<1x2x8x1xf32> to vector<2x8x1xf32>
    %210 = vector.extract_strided_slice %209 {offsets = [0, 0, 0], sizes = [2, 7, 1], strides = [1, 1, 1]} : vector<2x8x1xf32> to vector<2x7x1xf32>
    %211 = tpu.reciprocal %207 {approx = true} : vector<2x7x1xf32> -> vector<2x7x1xf32>
    %212 = arith.subf %210, %206 : vector<2x7x1xf32>
    %213 = arith.mulf %212, %211 : vector<2x7x1xf32>
    %cst_96 = arith.constant -5.000000e-01 : f32
    %214 = vector.broadcast %cst_96 : f32 to vector<2x7x1xf32>
    %215 = arith.mulf %214, %213 : vector<2x7x1xf32>
    %216 = arith.mulf %215, %213 : vector<2x7x1xf32>
    %217 = math.log %207 : vector<2x7x1xf32>
    %218 = arith.subf %216, %217 : vector<2x7x1xf32>
    %cst_97 = arith.constant 0.918938517 : f32
    %219 = vector.broadcast %cst_97 : f32 to vector<2x7x1xf32>
    %220 = arith.subf %218, %219 : vector<2x7x1xf32>
    %cst_98 = arith.constant dense<0.000000e+00> : vector<2x7xf32>
    %221 = vector.multi_reduction <add>, %220, %cst_98 [2] : vector<2x7x1xf32> to vector<2x7xf32>
    %222 = vector.shape_cast %221 : vector<2x7xf32> to vector<2x7x1xf32>
    %cst_99 = arith.constant dense<0.000000e+00> : vector<2x1xf32>
    %223 = vector.multi_reduction <add>, %222, %cst_99 [1] : vector<2x7x1xf32> to vector<2x1xf32>
    %cst_100 = arith.constant 0.000000e+00 : f32
    %224 = vector.broadcast %cst_100 : f32 to vector<2x1xf32>
    %225 = arith.subf %224, %223 : vector<2x1xf32>
    %cst_101 = arith.constant 2.500000e-01 : f32
    %226 = vector.broadcast %cst_101 : f32 to vector<2x1xf32>
    %227 = arith.mulf %226, %225 : vector<2x1xf32>
    %228 = arith.addf %180, %227 : vector<2x1xf32>
    %c0_102 = arith.constant 0 : index
    %c0_103 = arith.constant 0 : index
    %c0_104 = arith.constant 0 : index
    %229 = vector.load %arg9[%c0_102, %c0_103, %c0_104] : memref<1x2x1xf32, #tpu.memory_space<vmem>>, vector<1x2x1xf32>
    %230 = vector.shape_cast %229 : vector<1x2x1xf32> to vector<2x1xf32>
    %231 = vector.shape_cast %228 : vector<2x1xf32> to vector<1x2x1xf32>
    tpu.vector_store %arg9[%c0_102, %c0_103, %c0_104], %231 {strides = array<i32>} : memref<1x2x1xf32, #tpu.memory_space<vmem>>, vector<1x2x1xf32>,
    return
  }
  func.func @transform_0(%arg0: i32) -> (i32, i32, i32, i32) {
    %c0_i32 = arith.constant 0 : i32
    %c0_i32_0 = arith.constant 0 : i32
    %c0_i32_1 = arith.constant 0 : i32
    %c0_i32_2 = arith.constant 0 : i32
    return %arg0, %c0_i32, %c0_i32_0, %c0_i32_1 : i32, i32, i32, i32
  }
  func.func @transform_1(%arg0: i32) -> (i32, i32, i32, i32) {
    %c0_i32 = arith.constant 0 : i32
    %c0_i32_0 = arith.constant 0 : i32
    %c0_i32_1 = arith.constant 0 : i32
    %c0_i32_2 = arith.constant 0 : i32
    %c0_i32_3 = arith.constant 0 : i32
    return %c0_i32, %c0_i32_0, %c0_i32_1, %c0_i32_2 : i32, i32, i32, i32
  }
  func.func @transform_2(%arg0: i32) -> (i32, i32, i32, i32) {
    %c0_i32 = arith.constant 0 : i32
    %c0_i32_0 = arith.constant 0 : i32
    %c0_i32_1 = arith.constant 0 : i32
    %c0_i32_2 = arith.constant 0 : i32
    %c0_i32_3 = arith.constant 0 : i32
    return %c0_i32, %c0_i32_0, %c0_i32_1, %c0_i32_2 : i32, i32, i32, i32
  }
  func.func @transform_3(%arg0: i32) -> (i32, i32, i32, i32, i32) {
    %c0_i32 = arith.constant 0 : i32
    %c0_i32_0 = arith.constant 0 : i32
    %c0_i32_1 = arith.constant 0 : i32
    %c0_i32_2 = arith.constant 0 : i32
    %c0_i32_3 = arith.constant 0 : i32
    return %arg0, %c0_i32, %c0_i32_0, %c0_i32_1, %c0_i32_2 : i32, i32, i32, i32, i32
  }
  func.func @transform_4(%arg0: i32) -> (i32, i32, i32) {
    %c0_i32 = arith.constant 0 : i32
    %c0_i32_0 = arith.constant 0 : i32
    %c0_i32_1 = arith.constant 0 : i32
    return %arg0, %c0_i32, %c0_i32_0 : i32, i32, i32
  }
  func.func @transform_5(%arg0: i32) -> (i32, i32, i32) {
    %c0_i32 = arith.constant 0 : i32
    %c0_i32_0 = arith.constant 0 : i32
    %c0_i32_1 = arith.constant 0 : i32
    return %arg0, %c0_i32, %c0_i32_0 : i32, i32, i32
  }
  func.func @transform_6(%arg0: i32) -> (i32, i32, i32) {
    %c0_i32 = arith.constant 0 : i32
    %c0_i32_0 = arith.constant 0 : i32
    %c0_i32_1 = arith.constant 0 : i32
    return %arg0, %c0_i32, %c0_i32_0 : i32, i32, i32
  }
  func.func @transform_7(%arg0: i32) -> (i32, i32, i32) {
    %c0_i32 = arith.constant 0 : i32
    %c0_i32_0 = arith.constant 0 : i32
    %c0_i32_1 = arith.constant 0 : i32
    return %arg0, %c0_i32, %c0_i32_0 : i32, i32, i32
  }
  func.func @transform_8(%arg0: i32) -> (i32, i32, i32) {
    %c0_i32 = arith.constant 0 : i32
    %c0_i32_0 = arith.constant 0 : i32
    %c0_i32_1 = arith.constant 0 : i32
    return %arg0, %c0_i32, %c0_i32_0 : i32, i32, i32
  }
}

</mosaic_0001>

<llo_original>
// kernel: mdp_loss_forward.1
$region0: #{mdp_loss_forward.1}
  #allocation0 [shape = 'u32[]', space=smem, size = 0x4, offset = 0x4, fixed_abs, tag = 'smem constant byte address 0x4 - core index']
  #allocation1 [shape = 'u32[144,128]{1,0:T(1,128)}', space=vmem, size = 0x12000, scoped, tag = 'internal scratch']
  %s0 = inlined_call_operand.vmem [shape: f32[4,2,9,8], index: 0, kind: input, shape index: {}]
  %s1 = inlined_call_operand.vmem [shape: f32[2,2,8,4], index: 1, kind: input, shape index: {}]
  %s2 = inlined_call_operand.vmem [shape: f32[2,2,8,1], index: 2, kind: input, shape index: {}]
  %s3 = inlined_call_operand.vmem [shape: f32[4,2,2,8,8], index: 3, kind: input, shape index: {}]
  %s4 = inlined_call_operand.vmem [shape: f32[4,16,12], index: 4, kind: input, shape index: {}]
  %s5 = inlined_call_operand.vmem [shape: f32[4,1,16], index: 5, kind: input, shape index: {}]
  %s6 = inlined_call_operand.vmem [shape: f32[4,2,12], index: 6, kind: input, shape index: {}]
  %s7 = inlined_call_operand.vmem [shape: f32[4,1,2], index: 7, kind: input, shape index: {}]
  %s8 = inlined_call_operand.vmem [shape: f32[4,2,1], index: 8, kind: output, shape index: {}]
  %s9 = sld [smem:[#allocation0]]
  $region65: #{mdp_loss_forward.1} parent=0
    _
  %s11 = ssub.s32 1, %s9
  %s12 = scalar_select 0, %s11, %s9
  loop: start=0, step=1, limit=6
  $region2: #{mdp_loss_forward.1} parent=0 // loop_pre_header
    _
  $region3: #{mdp_loss_forward.1} parent=0 // loop_header
    %s14 = sphi 0, %s18
    %p15 = scmp.ge.s32.totalorder %s14, 6
    %s24 = sphi 0, %s26
    %s27 = sphi 0, %s24
    %s28 = sphi 0, %s27
    %s44 = sphi 0, %s28
    %s48 = sphi 0, %s48
    %s50 = sphi 0, %s48
    %s51 = sphi 0, %s50
    %s65 = sphi 0, %s51
    %s69 = sphi 0, %s69
    %s71 = sphi 0, %s69
    %s72 = sphi 0, %s71
    %s86 = sphi 0, %s72
    %s92 = sphi 0, %s94
    %s95 = sphi 0, %s92
    %s96 = sphi 0, %s95
    %s112 = sphi 0, %s96
    %s118 = sphi 0, %s120
    %s121 = sphi 0, %s118
    %s122 = sphi 0, %s121
    %s138 = sphi 0, %s122
    %s144 = sphi 0, %s146
    %s147 = sphi 0, %s144
    %s148 = sphi 0, %s147
    %s164 = sphi 0, %s148
    %s170 = sphi 0, %s172
    %s173 = sphi 0, %s170
    %s174 = sphi 0, %s173
    %s190 = sphi 0, %s174
    %s196 = sphi 0, %s198
    %s199 = sphi 0, %s196
    %s200 = sphi 0, %s199
    %s216 = sphi 0, %s200
    %s222 = sphi 0, %s224
    %s225 = sphi 0, %s222
    %s226 = sphi 0, %s225
    %s242 = sphi 0, %s226
  $region4: #{mdp_loss_forward.1} parent=0 // loop_header_branch
    %17 = sbr.rel (%p15) target = $region8
  $region5: #{mdp_loss_forward.1} parent=0 // loop_body
    %s19 = ssub.s32 %s14, 1
    %s20 = ssub.s32 %s14, 2
    %s21 = sadd.s32 %s14, 1
    %s22 = ssub.s32 %s14, %s21
    %p23 = scmp.eq.s32.totalorder %s22, 0
    %s25 = sadd.s32 %s24, 1
    %s26 = scalar_select %p23, %s24, %s25
    %p29 = pneg %p23
    %p30 = scmp.eq.s32.totalorder %s14, 3
    %p31 = por %p29, %p30
    %p32 = scmp.ne.s32.totalorder %s24, %s27
    %p33 = scmp.eq.s32.totalorder %s14, 0
    %p34 = por %p32, %p33
    %p35 = scmp.ne.s32.totalorder %s24, %s27
    %p36 = scmp.eq.s32.totalorder %s19, 3
    %p37 = por %p35, %p36
    %p38 = scmp.ne.s32.totalorder %s27, %s28
    %p39 = scmp.eq.s32.totalorder %s19, 0
    %p40 = por %p38, %p39
    %p41 = scmp.ne.s32.totalorder %s27, %s28
    %p42 = scmp.eq.s32.totalorder %s20, 3
    %p43 = por %p41, %p42
    %p45 = scmp.ne.s32.totalorder %s28, %s44
    %p46 = scmp.eq.s32.totalorder %s20, 0
    %p47 = por %p45, %p46
    %s49 = sadd.s32 %s48, 1
    %p52 = scmp.eq.s32.totalorder %s14, 3
    %p53 = scmp.ne.s32.totalorder %s48, %s50
    %p54 = scmp.eq.s32.totalorder %s14, 0
    %p55 = por %p53, %p54
    %p56 = scmp.ne.s32.totalorder %s48, %s50
    %p57 = scmp.eq.s32.totalorder %s19, 3
    %p58 = por %p56, %p57
    %p59 = scmp.ne.s32.totalorder %s50, %s51
    %p60 = scmp.eq.s32.totalorder %s19, 0
    %p61 = por %p59, %p60
    %p62 = scmp.ne.s32.totalorder %s50, %s51
    %p63 = scmp.eq.s32.totalorder %s20, 3
    %p64 = por %p62, %p63
    %p66 = scmp.ne.s32.totalorder %s51, %s65
    %p67 = scmp.eq.s32.totalorder %s20, 0
    %p68 = por %p66, %p67
    %s70 = sadd.s32 %s69, 1
    %p73 = scmp.eq.s32.totalorder %s14, 3
    %p74 = scmp.ne.s32.totalorder %s69, %s71
    %p75 = scmp.eq.s32.totalorder %s14, 0
    %p76 = por %p74, %p75
    %p77 = scmp.ne.s32.totalorder %s69, %s71
    %p78 = scmp.eq.s32.totalorder %s19, 3
    %p79 = por %p77, %p78
    %p80 = scmp.ne.s32.totalorder %s71, %s72
    %p81 = scmp.eq.s32.totalorder %s19, 0
    %p82 = por %p80, %p81
    %p83 = scmp.ne.s32.totalorder %s71, %s72
    %p84 = scmp.eq.s32.totalorder %s20, 3
    %p85 = por %p83, %p84
    %p87 = scmp.ne.s32.totalorder %s72, %s86
    %p88 = scmp.eq.s32.totalorder %s20, 0
    %p89 = por %p87, %p88
    %s90 = ssub.s32 %s14, %s21
    %p91 = scmp.eq.s32.totalorder %s90, 0
    %s93 = sadd.s32 %s92, 1
    %s94 = scalar_select %p91, %s92, %s93
    %p97 = pneg %p91
    %p98 = scmp.eq.s32.totalorder %s14, 3
    %p99 = por %p97, %p98
    %p100 = scmp.ne.s32.totalorder %s92, %s95
    %p101 = scmp.eq.s32.totalorder %s14, 0
    %p102 = por %p100, %p101
    %p103 = scmp.ne.s32.totalorder %s92, %s95
    %p104 = scmp.eq.s32.totalorder %s19, 3
    %p105 = por %p103, %p104
    %p106 = scmp.ne.s32.totalorder %s95, %s96
    %p107 = scmp.eq.s32.totalorder %s19, 0
    %p108 = por %p106, %p107
    %p109 = scmp.ne.s32.totalorder %s95, %s96
    %p110 = scmp.eq.s32.totalorder %s20, 3
    %p111 = por %p109, %p110
    %p113 = scmp.ne.s32.totalorder %s96, %s112
    %p114 = scmp.eq.s32.totalorder %s20, 0
    %p115 = por %p113, %p114
    %s116 = ssub.s32 %s14, %s21
    %p117 = scmp.eq.s32.totalorder %s116, 0
    %s119 = sadd.s32 %s118, 1
    %s120 = scalar_select %p117, %s118, %s119
    %p123 = pneg %p117
    %p124 = scmp.eq.s32.totalorder %s14, 3
    %p125 = por %p123, %p124
    %p126 = scmp.ne.s32.totalorder %s118, %s121
    %p127 = scmp.eq.s32.totalorder %s14, 0
    %p128 = por %p126, %p127
    %p129 = scmp.ne.s32.totalorder %s118, %s121
    %p130 = scmp.eq.s32.totalorder %s19, 3
    %p131 = por %p129, %p130
    %p132 = scmp.ne.s32.totalorder %s121, %s122
    %p133 = scmp.eq.s32.totalorder %s19, 0
    %p134 = por %p132, %p133
    %p135 = scmp.ne.s32.totalorder %s121, %s122
    %p136 = scmp.eq.s32.totalorder %s20, 3
    %p137 = por %p135, %p136
    %p139 = scmp.ne.s32.totalorder %s122, %s138
    %p140 = scmp.eq.s32.totalorder %s20, 0
    %p141 = por %p139, %p140
    %s142 = ssub.s32 %s14, %s21
    %p143 = scmp.eq.s32.totalorder %s142, 0
    %s145 = sadd.s32 %s144, 1
    %s146 = scalar_select %p143, %s144, %s145
    %p149 = pneg %p143
    %p150 = scmp.eq.s32.totalorder %s14, 3
    %p151 = por %p149, %p150
    %p152 = scmp.ne.s32.totalorder %s144, %s147
    %p153 = scmp.eq.s32.totalorder %s14, 0
    %p154 = por %p152, %p153
    %p155 = scmp.ne.s32.totalorder %s144, %s147
    %p156 = scmp.eq.s32.totalorder %s19, 3
    %p157 = por %p155, %p156
    %p158 = scmp.ne.s32.totalorder %s147, %s148
    %p159 = scmp.eq.s32.totalorder %s19, 0
    %p160 = por %p158, %p159
    %p161 = scmp.ne.s32.totalorder %s147, %s148
    %p162 = scmp.eq.s32.totalorder %s20, 3
    %p163 = por %p161, %p162
    %p165 = scmp.ne.s32.totalorder %s148, %s164
    %p166 = scmp.eq.s32.totalorder %s20, 0
    %p167 = por %p165, %p166
    %s168 = ssub.s32 %s14, %s21
    %p169 = scmp.eq.s32.totalorder %s168, 0
    %s171 = sadd.s32 %s170, 1
    %s172 = scalar_select %p169, %s170, %s171
    %p175 = pneg %p169
    %p176 = scmp.eq.s32.totalorder %s14, 3
    %p177 = por %p175, %p176
    %p178 = scmp.ne.s32.totalorder %s170, %s173
    %p179 = scmp.eq.s32.totalorder %s14, 0
    %p180 = por %p178, %p179
    %p181 = scmp.ne.s32.totalorder %s170, %s173
    %p182 = scmp.eq.s32.totalorder %s19, 3
    %p183 = por %p181, %p182
    %p184 = scmp.ne.s32.totalorder %s173, %s174
    %p185 = scmp.eq.s32.totalorder %s19, 0
    %p186 = por %p184, %p185
    %p187 = scmp.ne.s32.totalorder %s173, %s174
    %p188 = scmp.eq.s32.totalorder %s20, 3
    %p189 = por %p187, %p188
    %p191 = scmp.ne.s32.totalorder %s174, %s190
    %p192 = scmp.eq.s32.totalorder %s20, 0
    %p193 = por %p191, %p192
    %s194 = ssub.s32 %s14, %s21
    %p195 = scmp.eq.s32.totalorder %s194, 0
    %s197 = sadd.s32 %s196, 1
    %s198 = scalar_select %p195, %s196, %s197
    %p201 = pneg %p195
    %p202 = scmp.eq.s32.totalorder %s14, 3
    %p203 = por %p201, %p202
    %p204 = scmp.ne.s32.totalorder %s196, %s199
    %p205 = scmp.eq.s32.totalorder %s14, 0
    %p206 = por %p204, %p205
    %p207 = scmp.ne.s32.totalorder %s196, %s199
    %p208 = scmp.eq.s32.totalorder %s19, 3
    %p209 = por %p207, %p208
    %p210 = scmp.ne.s32.totalorder %s199, %s200
    %p211 = scmp.eq.s32.totalorder %s19, 0
    %p212 = por %p210, %p211
    %p213 = scmp.ne.s32.totalorder %s199, %s200
    %p214 = scmp.eq.s32.totalorder %s20, 3
    %p215 = por %p213, %p214
    %p217 = scmp.ne.s32.totalorder %s200, %s216
    %p218 = scmp.eq.s32.totalorder %s20, 0
    %p219 = por %p217, %p218
    %s220 = ssub.s32 %s14, %s21
    %p221 = scmp.eq.s32.totalorder %s220, 0
    %s223 = sadd.s32 %s222, 1
    %s224 = scalar_select %p221, %s222, %s223
    %p227 = pneg %p221
    %p228 = scmp.eq.s32.totalorder %s14, 3
    %p229 = por %p227, %p228
    %p230 = scmp.ne.s32.totalorder %s222, %s225
    %p231 = scmp.eq.s32.totalorder %s14, 0
    %p232 = por %p230, %p231
    %p233 = scmp.ne.s32.totalorder %s222, %s225
    %p234 = scmp.eq.s32.totalorder %s19, 3
    %p235 = por %p233, %p234
    %p236 = scmp.ne.s32.totalorder %s225, %s226
    %p237 = scmp.eq.s32.totalorder %s19, 0
    %p238 = por %p236, %p237
    %p239 = scmp.ne.s32.totalorder %s225, %s226
    %p240 = scmp.eq.s32.totalorder %s20, 3
    %p241 = por %p239, %p240
    %p243 = scmp.ne.s32.totalorder %s226, %s242
    %p244 = scmp.eq.s32.totalorder %s20, 0
    %p245 = por %p243, %p244
    %p246 = scmp.le.s32.totalorder 1, %s14
    %p247 = scmp.lt.s32.totalorder %s14, 5
    %p248 = pnand %p246, %p247
    %p249 = pneg %p248
    // Predicated region
    $region9: #{mdp_loss_forward.1} parent=5 // pred_check
      _
    $region10: #{mdp_loss_forward.1} parent=5 // pred_check_branch
      %251 = sbr.rel (%p248) target = $region12
    $region11: #{mdp_loss_forward.1} parent=5 // pred_region
      %s252 = ssub.s32 %s14, 1
      // Predicated region
      $region13: #{mdp_loss_forward.1} parent=11 // pred_check
        %p253 = pneg %p61
      $region14: #{mdp_loss_forward.1} parent=11 // pred_check_branch
        %255 = sbr.rel (%p253) target = $region16
      $region15: #{mdp_loss_forward.1} parent=11 // pred_region
        _
      $region16: #{mdp_loss_forward.1} parent=11 // pred_fallthru
        _
      // Predicated region
      $region17: #{mdp_loss_forward.1} parent=11 // pred_check
        %p256 = pneg %p82
      $region18: #{mdp_loss_forward.1} parent=11 // pred_check_branch
        %258 = sbr.rel (%p256) target = $region20
      $region19: #{mdp_loss_forward.1} parent=11 // pred_region
        _
      $region20: #{mdp_loss_forward.1} parent=11 // pred_fallthru
        _
    $region12: #{mdp_loss_forward.1} parent=5 // pred_fallthru
      _
    %p259 = scmp.lt.s32.totalorder %s14, 4
    // Predicated region
    $region21: #{mdp_loss_forward.1} parent=5 // pred_check
      %p260 = pneg %p259
    $region22: #{mdp_loss_forward.1} parent=5 // pred_check_branch
      %262 = sbr.rel (%p260) target = $region24
    $region23: #{mdp_loss_forward.1} parent=5 // pred_region
      // Predicated region
      $region25: #{mdp_loss_forward.1} parent=23 // pred_check
        %p263 = pneg %p34
      $region26: #{mdp_loss_forward.1} parent=23 // pred_check_branch
        %265 = sbr.rel (%p263) target = $region28
      $region27: #{mdp_loss_forward.1} parent=23 // pred_region
        %p266 = scmp.lt.s32.totalorder %s14, 3
        %s267 = scalar_select %p266, %s14, 3
        %s268 = smul.addr %s267, 4
        %s269 = smul.addr %s268, 8
        %s270 = scalar_lea.vmem %s0, %s269
      $region28: #{mdp_loss_forward.1} parent=23 // pred_fallthru
        _
      // Predicated region
      $region29: #{mdp_loss_forward.1} parent=23 // pred_check
        %p271 = pneg %p102
      $region30: #{mdp_loss_forward.1} parent=23 // pred_check_branch
        %273 = sbr.rel (%p271) target = $region32
      $region31: #{mdp_loss_forward.1} parent=23 // pred_region
        %p274 = scmp.lt.s32.totalorder %s14, 3
        %s275 = scalar_select %p274, %s14, 3
        %s276 = smul.addr %s275, 4
        %s277 = smul.addr %s276, 8
        %s278 = scalar_lea.vmem %s3, %s277
      $region32: #{mdp_loss_forward.1} parent=23 // pred_fallthru
        _
      // Predicated region
      $region33: #{mdp_loss_forward.1} parent=23 // pred_check
        %p279 = pneg %p128
      $region34: #{mdp_loss_forward.1} parent=23 // pred_check_branch
        %281 = sbr.rel (%p279) target = $region36
      $region35: #{mdp_loss_forward.1} parent=23 // pred_region
        %p282 = scmp.lt.s32.totalorder %s14, 3
        %s283 = scalar_select %p282, %s14, 3
        %s284 = smul.addr %s283, 2
        %s285 = smul.addr %s284, 8
        %s286 = scalar_lea.vmem %s4, %s285
      $region36: #{mdp_loss_forward.1} parent=23 // pred_fallthru
        _
      // Predicated region
      $region37: #{mdp_loss_forward.1} parent=23 // pred_check
        %p287 = pneg %p154
      $region38: #{mdp_loss_forward.1} parent=23 // pred_check_branch
        %289 = sbr.rel (%p287) target = $region40
      $region39: #{mdp_loss_forward.1} parent=23 // pred_region
        %p290 = scmp.lt.s32.totalorder %s14, 3
        %s291 = scalar_select %p290, %s14, 3
        %s292 = scalar_lea.vmem %s5, %s291
      $region40: #{mdp_loss_forward.1} parent=23 // pred_fallthru
        _
      // Predicated region
      $region41: #{mdp_loss_forward.1} parent=23 // pred_check
        %p293 = pneg %p180
      $region42: #{mdp_loss_forward.1} parent=23 // pred_check_branch
        %295 = sbr.rel (%p293) target = $region44
      $region43: #{mdp_loss_forward.1} parent=23 // pred_region
        %p296 = scmp.lt.s32.totalorder %s14, 3
        %s297 = scalar_select %p296, %s14, 3
        %s298 = smul.addr %s297, 2
        %s299 = scalar_lea.vmem %s6, %s298
      $region44: #{mdp_loss_forward.1} parent=23 // pred_fallthru
        _
      // Predicated region
      $region45: #{mdp_loss_forward.1} parent=23 // pred_check
        %p300 = pneg %p206
      $region46: #{mdp_loss_forward.1} parent=23 // pred_check_branch
        %302 = sbr.rel (%p300) target = $region48
      $region47: #{mdp_loss_forward.1} parent=23 // pred_region
        %p303 = scmp.lt.s32.totalorder %s14, 3
        %s304 = scalar_select %p303, %s14, 3
        %s305 = scalar_lea.vmem %s7, %s304
      $region48: #{mdp_loss_forward.1} parent=23 // pred_fallthru
        _
    $region24: #{mdp_loss_forward.1} parent=5 // pred_fallthru
      _
    %p306 = scmp.le.s32.totalorder 1, %s14
    %p307 = scmp.lt.s32.totalorder %s14, 5
    %p308 = pnand %p306, %p307
    %p309 = pneg %p308
    // Predicated region
    $region49: #{mdp_loss_forward.1} parent=5 // pred_check
      _
    $region50: #{mdp_loss_forward.1} parent=5 // pred_check_branch
      %311 = sbr.rel (%p308) target = $region52
    $region51: #{mdp_loss_forward.1} parent=5 // pred_region
      %s312 = ssub.s32 %s14, 1
      %p313 = scmp.lt.s32.totalorder %s19, 3
      %s314 = scalar_select %p313, %s19, 3
      %s315 = smul.addr %s314, 4
      %s316 = smul.addr %s315, 8
      %s317 = scalar_lea.vmem %s0, %s316
      %p318 = pneg %p40
      %p319 = pneg %p37
      %p320 = pneg %p61
      %p321 = pneg %p58
      %p322 = pneg %p82
      %p323 = pneg %p79
      %p324 = scmp.lt.s32.totalorder %s19, 3
      %s325 = scalar_select %p324, %s19, 3
      %s326 = smul.addr %s325, 4
      %s327 = smul.addr %s326, 8
      %s328 = scalar_lea.vmem %s3, %s327
      %p329 = pneg %p108
      %p330 = pneg %p105
      %p331 = scmp.lt.s32.totalorder %s19, 3
      %s332 = scalar_select %p331, %s19, 3
      %s333 = smul.addr %s332, 2
      %s334 = smul.addr %s333, 8
      %s335 = scalar_lea.vmem %s4, %s334
      %p336 = pneg %p134
      %p337 = pneg %p131
      %p338 = scmp.lt.s32.totalorder %s19, 3
      %s339 = scalar_select %p338, %s19, 3
      %s340 = scalar_lea.vmem %s5, %s339
      %p341 = pneg %p160
      %p342 = pneg %p157
      %p343 = scmp.lt.s32.totalorder %s19, 3
      %s344 = scalar_select %p343, %s19, 3
      %s345 = smul.addr %s344, 2
      %s346 = scalar_lea.vmem %s6, %s345
      %p347 = pneg %p186
      %p348 = pneg %p183
      %p349 = scmp.lt.s32.totalorder %s19, 3
      %s350 = scalar_select %p349, %s19, 3
      %s351 = scalar_lea.vmem %s7, %s350
      %p352 = pneg %p212
      %p353 = pneg %p209
      %p354 = pneg %p238
      %p355 = pneg %p235
      %p356 = scmp.lt.s32.totalorder %s19, 3
      %s357 = scalar_select %p356, %s19, 3
      %s358 = smul.addr %s357, 2
      %s359 = scalar_lea.vmem %s8, %s358
      %p360 = scmp.lt.s32.totalorder %s19, 3
      %s361 = scalar_select %p360, %s19, 3
      %s362 = smul.addr %s361, 4
      %s363 = smul.addr %s362, 8
      %s364 = scalar_lea.vmem %s0, %s363
      %p365 = scmp.lt.s32.totalorder %s19, 3
      %s366 = scalar_select %p365, %s19, 3
      %s367 = smul.addr %s366, 4
      %s368 = smul.addr %s367, 8
      %s369 = scalar_lea.vmem %s3, %s368
      %p370 = scmp.lt.s32.totalorder %s19, 3
      %s371 = scalar_select %p370, %s19, 3
      %s372 = smul.addr %s371, 2
      %s373 = smul.addr %s372, 8
      %s374 = scalar_lea.vmem %s4, %s373
      %p375 = scmp.lt.s32.totalorder %s19, 3
      %s376 = scalar_select %p375, %s19, 3
      %s377 = scalar_lea.vmem %s5, %s376
      %p378 = scmp.lt.s32.totalorder %s19, 3
      %s379 = scalar_select %p378, %s19, 3
      %s380 = smul.addr %s379, 2
      %s381 = scalar_lea.vmem %s6, %s380
      %p382 = scmp.lt.s32.totalorder %s19, 3
      %s383 = scalar_select %p382, %s19, 3
      %s384 = scalar_lea.vmem %s7, %s383
      %p385 = scmp.lt.s32.totalorder %s19, 3
      %s386 = scalar_select %p385, %s19, 3
      %s387 = smul.addr %s386, 2
      %s388 = scalar_lea.vmem %s8, %s387
      %v390 = vld [vmem:[%s364] sm:$0xff]
      %v391 = vld [vmem:[%s364 + $0x8] sm:$0x1]
      %v392 = vld [vmem:[%s364 + $0x10] sm:$0xff]
      %v393 = vld [vmem:[%s364 + $0x18] sm:$0x1]
      %v394 = vld [vmem:[%s377] sm:$0x1]
      %v395 = vld [vmem:[%s384] sm:$0x1]
      %v396 = vld [vmem:[%s374] sm:$0xff]
      %v397 = vld [vmem:[%s374 + $0x8] sm:$0xff]
      %v398 = vpack.c.bf16 %v397, %v396
      %v399 = vld [vmem:[%s381] sm:$0x3]
      %v400 = vpack.c.bf16 %v399, %v399
      %v401 = vld [vmem:[%s1] sm:$0xff]
      %v402 = vld [vmem:[%s1 + $0x8] sm:$0xff]
      %v405 = vrot.slane %v401, 7
      %v406 = vrot.slane %v402, 7
      %407 = vrot.lane.b32.xlu0 %v405, 8
      %v408 = vpop.permute.xlu0 %407
      %409 = vrot.lane.b32.xlu0 %v406, 8
      %v410 = vpop.permute.xlu0 %409
      %vm413 = vcmask 64512
      %v414 = vsel %vm413, %v390, %v408
      %v415 = vsel %vm413, %v391, %v408
      %v416 = vsel %vm413, %v392, %v410
      %v417 = vsel %vm413, %v393, %v410
      %v418 = vpack.c.bf16 %v415, %v414
      %v419 = vpack.c.bf16 %v417, %v416
      %v421 = vlaneseq
      %v422 = vshrl.u32 %v421, 7
      %v423 = vsub.s32 0, %v422
      %v424 = vrot.slane %v395, %v423
      %v427 = vshrl.u32 %v418, 16
      %v429 = vshll.u32 %v418, 16
      %v431 = vrot.slane %v429, 1
      %v432 = vor.u32 %v427, %v431
      %vm433 = vcmask 97280
      %v435 = vsel %vm433, %v432, 0
      %v438 = vsel %vm433, %v400, 0
      %440 = vmatprep.subr.bf16.mxu0 0
      %441 = vmatpush1.bf16.xpose.msra.mxu0 %v438
      %442 = vmatprep.subr.bf16.mxu0 0
      %443 = vmatpush1.bf16.xpose.msra.mxu0 0
      %444 = vmatprep.subr.bf16.mxu0 0
      %445 = vmatpush1.bf16.xpose.msra.mxu0 0
      %446 = vmatprep.subr.bf16.mxu0 0
      %447 = vmatpush1.bf16.xpose.msra.mxu0 0
      %448 = vmatprep.subr.bf16.mxu0 0
      %449 = vmatpush1.bf16.xpose.msra.mxu0 0
      %450 = vmatprep.subr.bf16.mxu0 0
      %451 = vmatpush1.bf16.xpose.msra.mxu0 0
      %452 = vmatprep.subr.bf16.mxu0 0
      %453 = vmatpush1.bf16.xpose.msra.mxu0 0
      %454 = vmatprep.subr.bf16.mxu0 0
      %455 = vmatpush1.bf16.xpose.msra.mxu0 0
      %456 = vmatprep.subr.bf16.mxu0 0
      %457 = vmatpush1.bf16.xpose.msra.mxu0 0
      %458 = vmatprep.subr.bf16.mxu0 0
      %459 = vmatpush1.bf16.xpose.msra.mxu0 0
      %460 = vmatprep.subr.bf16.mxu0 0
      %461 = vmatpush1.bf16.xpose.msra.mxu0 0
      %462 = vmatprep.subr.bf16.mxu0 0
      %463 = vmatpush1.bf16.xpose.msra.mxu0 0
      %464 = vmatprep.subr.bf16.mxu0 0
      %465 = vmatpush1.bf16.xpose.msra.mxu0 0
      %466 = vmatprep.subr.bf16.mxu0 0
      %467 = vmatpush1.bf16.xpose.msra.mxu0 0
      %468 = vmatprep.subr.bf16.mxu0 0
      %469 = vmatpush1.bf16.xpose.msra.mxu0 0
      %470 = vmatprep.subr.bf16.mxu0 0
      %471 = vmatpush1.bf16.xpose.msra.mxu0 0
      %472 = vmatprep.mubr.bf16.mxu0 0
      %473 = vmatmul.mubr.bf16.gmra.mrb[0].mxu0 %v435
      %v474 = vpop.f32.mrb[0].mxu0
      %v475 = vadd.f32 %v424, %v474
      %v476 = vpop.f32.mrb[0].mxu0
      %v477 = vpop.f32.mrb[0].mxu0
      %v478 = vpop.f32.mrb[0].mxu0
      %479 = vdwg.mxu0
      %v481 = vshrl.u32 %v419, 16
      %v483 = vshll.u32 %v419, 16
      %v485 = vrot.slane %v483, 1
      %v486 = vor.u32 %v481, %v485
      %v488 = vsel %vm433, %v486, 0
      %490 = vmatprep.subr.bf16.mxu0 0
      %491 = vmatpush1.bf16.xpose.msra.mxu0 %v438
      %492 = vmatprep.subr.bf16.mxu0 0
      %493 = vmatpush1.bf16.xpose.msra.mxu0 0
      %494 = vmatprep.subr.bf16.mxu0 0
      %495 = vmatpush1.bf16.xpose.msra.mxu0 0
      %496 = vmatprep.subr.bf16.mxu0 0
      %497 = vmatpush1.bf16.xpose.msra.mxu0 0
      %498 = vmatprep.subr.bf16.mxu0 0
      %499 = vmatpush1.bf16.xpose.msra.mxu0 0
      %500 = vmatprep.subr.bf16.mxu0 0
      %501 = vmatpush1.bf16.xpose.msra.mxu0 0
      %502 = vmatprep.subr.bf16.mxu0 0
      %503 = vmatpush1.bf16.xpose.msra.mxu0 0
      %504 = vmatprep.subr.bf16.mxu0 0
      %505 = vmatpush1.bf16.xpose.msra.mxu0 0
      %506 = vmatprep.subr.bf16.mxu0 0
      %507 = vmatpush1.bf16.xpose.msra.mxu0 0
      %508 = vmatprep.subr.bf16.mxu0 0
      %509 = vmatpush1.bf16.xpose.msra.mxu0 0
      %510 = vmatprep.subr.bf16.mxu0 0
      %511 = vmatpush1.bf16.xpose.msra.mxu0 0
      %512 = vmatprep.subr.bf16.mxu0 0
      %513 = vmatpush1.bf16.xpose.msra.mxu0 0
      %514 = vmatprep.subr.bf16.mxu0 0
      %515 = vmatpush1.bf16.xpose.msra.mxu0 0
      %516 = vmatprep.subr.bf16.mxu0 0
      %517 = vmatpush1.bf16.xpose.msra.mxu0 0
      %518 = vmatprep.subr.bf16.mxu0 0
      %519 = vmatpush1.bf16.xpose.msra.mxu0 0
      %520 = vmatprep.subr.bf16.mxu0 0
      %521 = vmatpush1.bf16.xpose.msra.mxu0 0
      %522 = vmatprep.mubr.bf16.mxu0 0
      %523 = vmatmul.mubr.bf16.gmra.mrb[0].mxu0 %v488
      %v524 = vpop.f32.mrb[0].mxu0
      %v525 = vadd.f32 %v424, %v524
      %v526 = vpop.f32.mrb[0].mxu0
      %v527 = vpop.f32.mrb[0].mxu0
      %v528 = vpop.f32.mrb[0].mxu0
      %529 = vdwg.mxu0
      %v530 = vmax.f32 %v475, 0.0
      %v531 = vmax.f32 %v525, 0.0
      %v532 = vand.u32 2147483647, %v475
      %v533 = vand.u32 2147483647, %v525
      %v534 = vsub.f32 0.0, %v532
      %v535 = vsub.f32 0.0, %v533
      %v536 = vmul.f32 %v534, 1.442695
      %v537 = vpow.pop %v536
      %v538 = vmul.f32 %v535, 1.442695
      %v539 = vpow.pop %v538
      %v540 = vadd.f32 %v537, 1.0
      %v541 = vlog2.pop %v540
      %v542 = vmul.f32 %v541, 0.6931472
      %v543 = vmul.f32 -0.5, %v537
      %v544 = vadd.f32 %v543, 1.0
      %v545 = vmul.f32 %v544, %v537
      %v546 = vand.u32 2147483647, %v537
      %vm547 = vcmp.lt.f32.partialorder %v546, 0.0004427343
      %v548 = vsel %vm547, %v545, %v542
      %v549 = vadd.f32 %v539, 1.0
      %v550 = vlog2.pop %v549
      %v551 = vmul.f32 %v550, 0.6931472
      %v552 = vmul.f32 -0.5, %v539
      %v553 = vadd.f32 %v552, 1.0
      %v554 = vmul.f32 %v553, %v539
      %v555 = vand.u32 2147483647, %v539
      %vm556 = vcmp.lt.f32.partialorder %v555, 0.0004427343
      %v557 = vsel %vm556, %v554, %v551
      %v558 = vadd.f32 %v530, %v548
      %v559 = vadd.f32 %v531, %v557
      %v560 = vadd.f32 %v558, 0.001
      %v561 = vadd.f32 %v559, 0.001
      %v562 = vld [vmem:[%s2] sm:$0xff]
      %v563 = vld [vmem:[%s2 + $0x8] sm:$0xff]
      %v564 = vrcp.pop %v560
      %v565 = vrcp.pop %v561
      %v566 = vsub.f32 %v562, %v475
      %v567 = vsub.f32 %v563, %v525
      %570 = vrot.lane.b32.xlu0 %v564, 127
      %v571 = vpop.permute.xlu0 %570
      %572 = vrot.lane.b32.xlu0 %v565, 127
      %v573 = vpop.permute.xlu0 %572
      %v576 = vmul.f32 %v566, %v571
      %v577 = vmul.f32 %v567, %v573
      %v578 = vmul.f32 %v576, -0.5
      %v579 = vmul.f32 %v577, -0.5
      %v580 = vmul.f32 %v578, %v576
      %v581 = vmul.f32 %v579, %v577
      %v582 = vlog2.pop %v560
      %v583 = vmul.f32 %v582, 0.6931472
      %v584 = vlog2.pop %v561
      %v585 = vmul.f32 %v584, 0.6931472
      %588 = vrot.lane.b32.xlu0 %v583, 127
      %v589 = vpop.permute.xlu0 %588
      %590 = vrot.lane.b32.xlu0 %v585, 127
      %v591 = vpop.permute.xlu0 %590
      %v594 = vsub.f32 %v580, %v589
      %v595 = vsub.f32 %v581, %v591
      %v596 = vsub.f32 %v594, 0.9189385
      %v597 = vsub.f32 %v595, 0.9189385
      %v598 = vadd.f32 %v596, 0.0
      %v599 = vadd.f32 %v597, 0.0
      %vm600 = vcmask 7168
      %v601 = vsel %vm600, %v598, 0.0
      %v602 = vrot.slane %v601, 4
      %v603 = vadd.f32 %v601, %v602
      %v604 = vrot.slane %v603, 2
      %v605 = vadd.f32 %v603, %v604
      %v606 = vrot.slane %v605, 1
      %v607 = vadd.f32 %v605, %v606
      %v608 = vsel %vm600, %v599, 0.0
      %v609 = vrot.slane %v608, 4
      %v610 = vadd.f32 %v608, %v609
      %v611 = vrot.slane %v610, 2
      %v612 = vadd.f32 %v610, %v611
      %v613 = vrot.slane %v612, 1
      %v614 = vadd.f32 %v612, %v613
      %v615 = vsub.f32 0.0, %v607
      %v616 = vsub.f32 0.0, %v614
      %v617 = vadd.f32 %v615, 0.0
      %v618 = vadd.f32 %v616, 0.0
      %v619 = vld [vmem:[%s1] sm:$0xff]
      %v620 = vld [vmem:[%s1 + $0x8] sm:$0xff]
      %623 = vrot.lane.b32.xlu0 %v619, 8
      %v624 = vpop.permute.xlu0 %623
      %625 = vrot.lane.b32.xlu0 %v620, 8
      %v626 = vpop.permute.xlu0 %625
      %v629 = vsel %vm413, %v390, %v624
      %v630 = vsel %vm413, %v392, %v626
      %v631 = vpack.c.bf16 %v629, %v629
      %v632 = vpack.c.bf16 %v630, %v630
      %v634 = vlaneseq
      %v635 = vshrl.u32 %v634, 7
      %v636 = vsub.s32 0, %v635
      %v637 = vrot.slane %v394, %v636
      %v640 = vsel %vm433, %v631, 0
      %v643 = vsel %vm433, %v398, 0
      %645 = vmatprep.subr.bf16.mxu0 0
      %646 = vmatpush1.bf16.xpose.msra.mxu0 %v643
      %647 = vmatprep.subr.bf16.mxu0 0
      %648 = vmatpush1.bf16.xpose.msra.mxu0 0
      %649 = vmatprep.subr.bf16.mxu0 0
      %650 = vmatpush1.bf16.xpose.msra.mxu0 0
      %651 = vmatprep.subr.bf16.mxu0 0
      %652 = vmatpush1.bf16.xpose.msra.mxu0 0
      %653 = vmatprep.subr.bf16.mxu0 0
      %654 = vmatpush1.bf16.xpose.msra.mxu0 0
      %655 = vmatprep.subr.bf16.mxu0 0
      %656 = vmatpush1.bf16.xpose.msra.mxu0 0
      %657 = vmatprep.subr.bf16.mxu0 0
      %658 = vmatpush1.bf16.xpose.msra.mxu0 0
      %659 = vmatprep.subr.bf16.mxu0 0
      %660 = vmatpush1.bf16.xpose.msra.mxu0 0
      %661 = vmatprep.subr.bf16.mxu0 0
      %662 = vmatpush1.bf16.xpose.msra.mxu0 0
      %663 = vmatprep.subr.bf16.mxu0 0
      %664 = vmatpush1.bf16.xpose.msra.mxu0 0
      %665 = vmatprep.subr.bf16.mxu0 0
      %666 = vmatpush1.bf16.xpose.msra.mxu0 0
      %667 = vmatprep.subr.bf16.mxu0 0
      %668 = vmatpush1.bf16.xpose.msra.mxu0 0
      %669 = vmatprep.subr.bf16.mxu0 0
      %670 = vmatpush1.bf16.xpose.msra.mxu0 0
      %671 = vmatprep.subr.bf16.mxu0 0
      %672 = vmatpush1.bf16.xpose.msra.mxu0 0
      %673 = vmatprep.subr.bf16.mxu0 0
      %674 = vmatpush1.bf16.xpose.msra.mxu0 0
      %675 = vmatprep.subr.bf16.mxu0 0
      %676 = vmatpush1.bf16.xpose.msra.mxu0 0
      %677 = vmatprep.mubr.bf16.mxu0 0
      %678 = vmatmul.mubr.bf16.gmra.mrb[0].mxu0 %v640
      %v679 = vpop.f32.mrb[0].mxu0
      %v680 = vadd.f32 %v637, %v679
      %v681 = vpop.f32.mrb[0].mxu0
      %v682 = vpop.f32.mrb[0].mxu0
      %v683 = vpop.f32.mrb[0].mxu0
      %684 = vdwg.mxu0
      %v686 = vsel %vm433, %v632, 0
      %688 = vmatprep.subr.bf16.mxu0 0
      %689 = vmatpush1.bf16.xpose.msra.mxu0 %v643
      %690 = vmatprep.subr.bf16.mxu0 0
      %691 = vmatpush1.bf16.xpose.msra.mxu0 0
      %692 = vmatprep.subr.bf16.mxu0 0
      %693 = vmatpush1.bf16.xpose.msra.mxu0 0
      %694 = vmatprep.subr.bf16.mxu0 0
      %695 = vmatpush1.bf16.xpose.msra.mxu0 0
      %696 = vmatprep.subr.bf16.mxu0 0
      %697 = vmatpush1.bf16.xpose.msra.mxu0 0
      %698 = vmatprep.subr.bf16.mxu0 0
      %699 = vmatpush1.bf16.xpose.msra.mxu0 0
      %700 = vmatprep.subr.bf16.mxu0 0
      %701 = vmatpush1.bf16.xpose.msra.mxu0 0
      %702 = vmatprep.subr.bf16.mxu0 0
      %703 = vmatpush1.bf16.xpose.msra.mxu0 0
      %704 = vmatprep.subr.bf16.mxu0 0
      %705 = vmatpush1.bf16.xpose.msra.mxu0 0
      %706 = vmatprep.subr.bf16.mxu0 0
      %707 = vmatpush1.bf16.xpose.msra.mxu0 0
      %708 = vmatprep.subr.bf16.mxu0 0
      %709 = vmatpush1.bf16.xpose.msra.mxu0 0
      %710 = vmatprep.subr.bf16.mxu0 0
      %711 = vmatpush1.bf16.xpose.msra.mxu0 0
      %712 = vmatprep.subr.bf16.mxu0 0
      %713 = vmatpush1.bf16.xpose.msra.mxu0 0
      %714 = vmatprep.subr.bf16.mxu0 0
      %715 = vmatpush1.bf16.xpose.msra.mxu0 0
      %716 = vmatprep.subr.bf16.mxu0 0
      %717 = vmatpush1.bf16.xpose.msra.mxu0 0
      %718 = vmatprep.subr.bf16.mxu0 0
      %719 = vmatpush1.bf16.xpose.msra.mxu0 0
      %720 = vmatprep.mubr.bf16.mxu0 0
      %721 = vmatmul.mubr.bf16.gmra.mrb[0].mxu0 %v686
      %v722 = vpop.f32.mrb[0].mxu0
      %v723 = vadd.f32 %v637, %v722
      %v724 = vpop.f32.mrb[0].mxu0
      %v725 = vpop.f32.mrb[0].mxu0
      %v726 = vpop.f32.mrb[0].mxu0
      %727 = vdwg.mxu0
      %v728 = vmax.f32 %v680, 0.0
      %v729 = vmax.f32 %v723, 0.0
      %v730 = vand.u32 2147483647, %v680
      %v731 = vand.u32 2147483647, %v723
      %v732 = vsub.f32 0.0, %v730
      %v733 = vsub.f32 0.0, %v731
      %v734 = vmul.f32 %v732, 1.442695
      %v735 = vpow.pop %v734
      %v736 = vmul.f32 %v733, 1.442695
      %v737 = vpow.pop %v736
      %v738 = vadd.f32 %v735, 1.0
      %v739 = vlog2.pop %v738
      %v740 = vmul.f32 %v739, 0.6931472
      %v741 = vmul.f32 -0.5, %v735
      %v742 = vadd.f32 %v741, 1.0
      %v743 = vmul.f32 %v742, %v735
      %v744 = vand.u32 2147483647, %v735
      %vm745 = vcmp.lt.f32.partialorder %v744, 0.0004427343
      %v746 = vsel %vm745, %v743, %v740
      %v747 = vadd.f32 %v737, 1.0
      %v748 = vlog2.pop %v747
      %v749 = vmul.f32 %v748, 0.6931472
      %v750 = vmul.f32 -0.5, %v737
      %v751 = vadd.f32 %v750, 1.0
      %v752 = vmul.f32 %v751, %v737
      %v753 = vand.u32 2147483647, %v737
      %vm754 = vcmp.lt.f32.partialorder %v753, 0.0004427343
      %v755 = vsel %vm754, %v752, %v749
      %v756 = vadd.f32 %v728, %v746
      %v757 = vadd.f32 %v729, %v755
      %v758 = vadd.f32 %v756, 0.001
      %v759 = vadd.f32 %v757, 0.001
      %v760 = vrcp.pop %v758
      %v761 = vrcp.pop %v759
      %v764 = vrot.slane %v680, 7
      %v765 = vrot.slane %v723, 7
      %v768 = vsub.f32 %v390, %v764
      %v769 = vsub.f32 %v391, %v764
      %v770 = vsub.f32 %v392, %v765
      %v771 = vsub.f32 %v393, %v765
      %v774 = vrot.slane %v760, 7
      %v775 = vrot.slane %v761, 7
      %776 = vrot.lane.b32.xlu0 %v774, 120
      %v777 = vpop.permute.xlu0 %776
      %778 = vrot.lane.b32.xlu0 %v775, 120
      %v779 = vpop.permute.xlu0 %778
      %v782 = vmul.f32 %v768, %v777
      %v783 = vmul.f32 %v769, %v777
      %v784 = vmul.f32 %v770, %v779
      %v785 = vmul.f32 %v771, %v779
      %v786 = vmul.f32 %v782, -0.5
      %v787 = vmul.f32 %v783, -0.5
      %v788 = vmul.f32 %v784, -0.5
      %v789 = vmul.f32 %v785, -0.5
      %v790 = vmul.f32 %v786, %v782
      %v791 = vmul.f32 %v787, %v783
      %v792 = vmul.f32 %v788, %v784
      %v793 = vmul.f32 %v789, %v785
      %v794 = vlog2.pop %v758
      %v795 = vmul.f32 %v794, 0.6931472
      %v796 = vlog2.pop %v759
      %v797 = vmul.f32 %v796, 0.6931472
      %v800 = vrot.slane %v795, 7
      %v801 = vrot.slane %v797, 7
      %802 = vrot.lane.b32.xlu0 %v800, 120
      %v803 = vpop.permute.xlu0 %802
      %804 = vrot.lane.b32.xlu0 %v801, 120
      %v805 = vpop.permute.xlu0 %804
      %v808 = vsub.f32 %v790, %v803
      %v809 = vsub.f32 %v791, %v803
      %v810 = vsub.f32 %v792, %v805
      %v811 = vsub.f32 %v793, %v805
      %v812 = vsub.f32 %v808, 0.9189385
      %v813 = vsub.f32 %v809, 0.9189385
      %v814 = vsub.f32 %v810, 0.9189385
      %v815 = vsub.f32 %v811, 0.9189385
      %vm816 = vcmask 64513
      %v817 = vsel %vm816, %v812, 0.0
      %818 = vadd.xlane.f32.xlu0 %v817
      %v819 = vpop.xlane.xlu0 %818
      %vm820 = vcmask 57344
      %v821 = vsel %vm820, %v813, 0.0
      %822 = vadd.xlane.f32.xlu0 %v821
      %v823 = vpop.xlane.xlu0 %822
      %v824 = vsel %vm816, %v814, 0.0
      %825 = vadd.xlane.f32.xlu0 %v824
      %v826 = vpop.xlane.xlu0 %825
      %v827 = vsel %vm820, %v815, 0.0
      %828 = vadd.xlane.f32.xlu0 %v827
      %v829 = vpop.xlane.xlu0 %828
      %vm834 = vcmask 1046528
      %v835 = vrot.slane %v819, 1
      %v836 = vrot.slane %v823, 1
      %v837 = vsel %vm834, %v835, %v836
      %v838 = vrot.slane %v826, 1
      %v839 = vrot.slane %v829, 1
      %v840 = vsel %vm834, %v838, %v839
      %v843 = vrot.slane %v837, 4
      %v844 = vadd.f32 %v837, %v843
      %v845 = vrot.slane %v844, 2
      %v846 = vadd.f32 %v844, %v845
      %v847 = vrot.slane %v846, 1
      %v848 = vadd.f32 %v846, %v847
      %v849 = vrot.slane %v840, 4
      %v850 = vadd.f32 %v840, %v849
      %v851 = vrot.slane %v850, 2
      %v852 = vadd.f32 %v850, %v851
      %v853 = vrot.slane %v852, 1
      %v854 = vadd.f32 %v852, %v853
      %v855 = vsub.f32 0.0, %v848
      %v856 = vsub.f32 0.0, %v854
      %v857 = vadd.f32 %v617, %v855
      %v858 = vadd.f32 %v618, %v856
      %v859 = vld [vmem:[%s369] sm:$0xff]
      %v860 = vld [vmem:[%s369 + $0x8] sm:$0xff]
      %863 = vrot.lane.b32.xlu0 %v859, 8
      %v864 = vpop.permute.xlu0 %863
      %865 = vrot.lane.b32.xlu0 %v860, 8
      %v866 = vpop.permute.xlu0 %865
      %v869 = vmul.f32 %v758, %v864
      %v870 = vmul.f32 %v759, %v866
      %873 = vrot.lane.b32.xlu0 %v869, 120
      %v874 = vpop.permute.xlu0 %873
      %875 = vrot.lane.b32.xlu0 %v870, 120
      %v876 = vpop.permute.xlu0 %875
      %v879 = vadd.f32 %v680, %v874
      %v880 = vadd.f32 %v723, %v876
      %v881 = vmax.f32 %v879, -5.0
      %v882 = vmax.f32 %v880, -5.0
      %v883 = vmin.f32 %v881, 5.0
      %v884 = vmin.f32 %v882, 5.0
      %v885 = vsel %vm413, %v883, %v624
      %v886 = vsel %vm413, %v884, %v626
      %v887 = vpack.c.bf16 %v885, %v885
      %v888 = vpack.c.bf16 %v886, %v886
      %v890 = vsel %vm433, %v887, 0
      %892 = vmatprep.subr.bf16.mxu0 0
      %893 = vmatpush1.bf16.xpose.msra.mxu0 %v438
      %894 = vmatprep.subr.bf16.mxu0 0
      %895 = vmatpush1.bf16.xpose.msra.mxu0 0
      %896 = vmatprep.subr.bf16.mxu0 0
      %897 = vmatpush1.bf16.xpose.msra.mxu0 0
      %898 = vmatprep.subr.bf16.mxu0 0
      %899 = vmatpush1.bf16.xpose.msra.mxu0 0
      %900 = vmatprep.subr.bf16.mxu0 0
      %901 = vmatpush1.bf16.xpose.msra.mxu0 0
      %902 = vmatprep.subr.bf16.mxu0 0
      %903 = vmatpush1.bf16.xpose.msra.mxu0 0
      %904 = vmatprep.subr.bf16.mxu0 0
      %905 = vmatpush1.bf16.xpose.msra.mxu0 0
      %906 = vmatprep.subr.bf16.mxu0 0
      %907 = vmatpush1.bf16.xpose.msra.mxu0 0
      %908 = vmatprep.subr.bf16.mxu0 0
      %909 = vmatpush1.bf16.xpose.msra.mxu0 0
      %910 = vmatprep.subr.bf16.mxu0 0
      %911 = vmatpush1.bf16.xpose.msra.mxu0 0
      %912 = vmatprep.subr.bf16.mxu0 0
      %913 = vmatpush1.bf16.xpose.msra.mxu0 0
      %914 = vmatprep.subr.bf16.mxu0 0
      %915 = vmatpush1.bf16.xpose.msra.mxu0 0
      %916 = vmatprep.subr.bf16.mxu0 0
      %917 = vmatpush1.bf16.xpose.msra.mxu0 0
      %918 = vmatprep.subr.bf16.mxu0 0
      %919 = vmatpush1.bf16.xpose.msra.mxu0 0
      %920 = vmatprep.subr.bf16.mxu0 0
      %921 = vmatpush1.bf16.xpose.msra.mxu0 0
      %922 = vmatprep.subr.bf16.mxu0 0
      %923 = vmatpush1.bf16.xpose.msra.mxu0 0
      %924 = vmatprep.mubr.bf16.mxu0 0
      %925 = vmatmul.mubr.bf16.gmra.mrb[0].mxu0 %v890
      %v926 = vpop.f32.mrb[0].mxu0
      %v927 = vadd.f32 %v424, %v926
      %v928 = vpop.f32.mrb[0].mxu0
      %v929 = vpop.f32.mrb[0].mxu0
      %v930 = vpop.f32.mrb[0].mxu0
      %931 = vdwg.mxu0
      %v933 = vsel %vm433, %v888, 0
      %935 = vmatprep.subr.bf16.mxu0 0
      %936 = vmatpush1.bf16.xpose.msra.mxu0 %v438
      %937 = vmatprep.subr.bf16.mxu0 0
      %938 = vmatpush1.bf16.xpose.msra.mxu0 0
      %939 = vmatprep.subr.bf16.mxu0 0
      %940 = vmatpush1.bf16.xpose.msra.mxu0 0
      %941 = vmatprep.subr.bf16.mxu0 0
      %942 = vmatpush1.bf16.xpose.msra.mxu0 0
      %943 = vmatprep.subr.bf16.mxu0 0
      %944 = vmatpush1.bf16.xpose.msra.mxu0 0
      %945 = vmatprep.subr.bf16.mxu0 0
      %946 = vmatpush1.bf16.xpose.msra.mxu0 0
      %947 = vmatprep.subr.bf16.mxu0 0
      %948 = vmatpush1.bf16.xpose.msra.mxu0 0
      %949 = vmatprep.subr.bf16.mxu0 0
      %950 = vmatpush1.bf16.xpose.msra.mxu0 0
      %951 = vmatprep.subr.bf16.mxu0 0
      %952 = vmatpush1.bf16.xpose.msra.mxu0 0
      %953 = vmatprep.subr.bf16.mxu0 0
      %954 = vmatpush1.bf16.xpose.msra.mxu0 0
      %955 = vmatprep.subr.bf16.mxu0 0
      %956 = vmatpush1.bf16.xpose.msra.mxu0 0
      %957 = vmatprep.subr.bf16.mxu0 0
      %958 = vmatpush1.bf16.xpose.msra.mxu0 0
      %959 = vmatprep.subr.bf16.mxu0 0
      %960 = vmatpush1.bf16.xpose.msra.mxu0 0
      %961 = vmatprep.subr.bf16.mxu0 0
      %962 = vmatpush1.bf16.xpose.msra.mxu0 0
      %963 = vmatprep.subr.bf16.mxu0 0
      %964 = vmatpush1.bf16.xpose.msra.mxu0 0
      %965 = vmatprep.subr.bf16.mxu0 0
      %966 = vmatpush1.bf16.xpose.msra.mxu0 0
      %967 = vmatprep.mubr.bf16.mxu0 0
      %968 = vmatmul.mubr.bf16.gmra.mrb[0].mxu0 %v933
      %v969 = vpop.f32.mrb[0].mxu0
      %v970 = vadd.f32 %v424, %v969
      %v971 = vpop.f32.mrb[0].mxu0
      %v972 = vpop.f32.mrb[0].mxu0
      %v973 = vpop.f32.mrb[0].mxu0
      %974 = vdwg.mxu0
      %v975 = vmax.f32 %v927, 0.0
      %v976 = vmax.f32 %v970, 0.0
      %v977 = vand.u32 2147483647, %v927
      %v978 = vand.u32 2147483647, %v970
      %v979 = vsub.f32 0.0, %v977
      %v980 = vsub.f32 0.0, %v978
      %v981 = vmul.f32 %v979, 1.442695
      %v982 = vpow.pop %v981
      %v983 = vmul.f32 %v980, 1.442695
      %v984 = vpow.pop %v983
      %v985 = vadd.f32 %v982, 1.0
      %v986 = vlog2.pop %v985
      %v987 = vmul.f32 %v986, 0.6931472
      %v988 = vmul.f32 -0.5, %v982
      %v989 = vadd.f32 %v988, 1.0
      %v990 = vmul.f32 %v989, %v982
      %v991 = vand.u32 2147483647, %v982
      %vm992 = vcmp.lt.f32.partialorder %v991, 0.0004427343
      %v993 = vsel %vm992, %v990, %v987
      %v994 = vadd.f32 %v984, 1.0
      %v995 = vlog2.pop %v994
      %v996 = vmul.f32 %v995, 0.6931472
      %v997 = vmul.f32 -0.5, %v984
      %v998 = vadd.f32 %v997, 1.0
      %v999 = vmul.f32 %v998, %v984
      %v1000 = vand.u32 2147483647, %v984
      %vm1001 = vcmp.lt.f32.partialorder %v1000, 0.0004427343
      %v1002 = vsel %vm1001, %v999, %v996
      %v1003 = vadd.f32 %v975, %v993
      %v1004 = vadd.f32 %v976, %v1002
      %v1005 = vadd.f32 %v1003, 0.001
      %v1006 = vadd.f32 %v1004, 0.001
      %v1007 = vld [vmem:[%s2] sm:$0xff]
      %v1008 = vld [vmem:[%s2 + $0x8] sm:$0xff]
      %v1009 = vrcp.pop %v1005
      %v1010 = vrcp.pop %v1006
      %v1011 = vsub.f32 %v1007, %v927
      %v1012 = vsub.f32 %v1008, %v970
      %1015 = vrot.lane.b32.xlu0 %v1009, 127
      %v1016 = vpop.permute.xlu0 %1015
      %1017 = vrot.lane.b32.xlu0 %v1010, 127
      %v1018 = vpop.permute.xlu0 %1017
      %v1021 = vmul.f32 %v1011, %v1016
      %v1022 = vmul.f32 %v1012, %v1018
      %v1023 = vmul.f32 %v1021, -0.5
      %v1024 = vmul.f32 %v1022, -0.5
      %v1025 = vmul.f32 %v1023, %v1021
      %v1026 = vmul.f32 %v1024, %v1022
      %v1027 = vlog2.pop %v1005
      %v1028 = vmul.f32 %v1027, 0.6931472
      %v1029 = vlog2.pop %v1006
      %v1030 = vmul.f32 %v1029, 0.6931472
      %1033 = vrot.lane.b32.xlu0 %v1028, 127
      %v1034 = vpop.permute.xlu0 %1033
      %1035 = vrot.lane.b32.xlu0 %v1030, 127
      %v1036 = vpop.permute.xlu0 %1035
      %v1039 = vsub.f32 %v1025, %v1034
      %v1040 = vsub.f32 %v1026, %v1036
      %v1041 = vsub.f32 %v1039, 0.9189385
      %v1042 = vsub.f32 %v1040, 0.9189385
      %v1043 = vadd.f32 %v1041, 0.0
      %v1044 = vadd.f32 %v1042, 0.0
      %v1045 = vsel %vm600, %v1043, 0.0
      %v1046 = vrot.slane %v1045, 4
      %v1047 = vadd.f32 %v1045, %v1046
      %v1048 = vrot.slane %v1047, 2
      %v1049 = vadd.f32 %v1047, %v1048
      %v1050 = vrot.slane %v1049, 1
      %v1051 = vadd.f32 %v1049, %v1050
      %v1052 = vsel %vm600, %v1044, 0.0
      %v1053 = vrot.slane %v1052, 4
      %v1054 = vadd.f32 %v1052, %v1053
      %v1055 = vrot.slane %v1054, 2
      %v1056 = vadd.f32 %v1054, %v1055
      %v1057 = vrot.slane %v1056, 1
      %v1058 = vadd.f32 %v1056, %v1057
      %v1059 = vsub.f32 0.0, %v1051
      %v1060 = vsub.f32 0.0, %v1058
      %v1061 = vmul.f32 %v1059, 0.5
      %v1062 = vmul.f32 %v1060, 0.5
      %v1063 = vadd.f32 %v857, %v1061
      %v1064 = vadd.f32 %v858, %v1062
      %s1065 = scalar_lea.vmem %s1, 16
      %v1066 = vld [vmem:[%s1065] sm:$0xff]
      %v1067 = vld [vmem:[%s1065 + $0x8] sm:$0xff]
      %1070 = vrot.lane.b32.xlu0 %v1066, 8
      %v1071 = vpop.permute.xlu0 %1070
      %1072 = vrot.lane.b32.xlu0 %v1067, 8
      %v1073 = vpop.permute.xlu0 %1072
      %v1076 = vsel %vm413, %v883, %v1071
      %v1077 = vsel %vm413, %v884, %v1073
      %v1078 = vpack.c.bf16 %v1076, %v1076
      %v1079 = vpack.c.bf16 %v1077, %v1077
      %v1081 = vsel %vm433, %v1078, 0
      %1083 = vmatprep.subr.bf16.mxu0 0
      %1084 = vmatpush1.bf16.xpose.msra.mxu0 %v643
      %1085 = vmatprep.subr.bf16.mxu0 0
      %1086 = vmatpush1.bf16.xpose.msra.mxu0 0
      %1087 = vmatprep.subr.bf16.mxu0 0
      %1088 = vmatpush1.bf16.xpose.msra.mxu0 0
      %1089 = vmatprep.subr.bf16.mxu0 0
      %1090 = vmatpush1.bf16.xpose.msra.mxu0 0
      %1091 = vmatprep.subr.bf16.mxu0 0
      %1092 = vmatpush1.bf16.xpose.msra.mxu0 0
      %1093 = vmatprep.subr.bf16.mxu0 0
      %1094 = vmatpush1.bf16.xpose.msra.mxu0 0
      %1095 = vmatprep.subr.bf16.mxu0 0
      %1096 = vmatpush1.bf16.xpose.msra.mxu0 0
      %1097 = vmatprep.subr.bf16.mxu0 0
      %1098 = vmatpush1.bf16.xpose.msra.mxu0 0
      %1099 = vmatprep.subr.bf16.mxu0 0
      %1100 = vmatpush1.bf16.xpose.msra.mxu0 0
      %1101 = vmatprep.subr.bf16.mxu0 0
      %1102 = vmatpush1.bf16.xpose.msra.mxu0 0
      %1103 = vmatprep.subr.bf16.mxu0 0
      %1104 = vmatpush1.bf16.xpose.msra.mxu0 0
      %1105 = vmatprep.subr.bf16.mxu0 0
      %1106 = vmatpush1.bf16.xpose.msra.mxu0 0
      %1107 = vmatprep.subr.bf16.mxu0 0
      %1108 = vmatpush1.bf16.xpose.msra.mxu0 0
      %1109 = vmatprep.subr.bf16.mxu0 0
      %1110 = vmatpush1.bf16.xpose.msra.mxu0 0
      %1111 = vmatprep.subr.bf16.mxu0 0
      %1112 = vmatpush1.bf16.xpose.msra.mxu0 0
      %1113 = vmatprep.subr.bf16.mxu0 0
      %1114 = vmatpush1.bf16.xpose.msra.mxu0 0
      %1115 = vmatprep.mubr.bf16.mxu0 0
      %1116 = vmatmul.mubr.bf16.gmra.mrb[0].mxu0 %v1081
      %v1117 = vpop.f32.mrb[0].mxu0
      %v1118 = vadd.f32 %v637, %v1117
      %v1119 = vpop.f32.mrb[0].mxu0
      %v1120 = vpop.f32.mrb[0].mxu0
      %v1121 = vpop.f32.mrb[0].mxu0
      %1122 = vdwg.mxu0
      %v1124 = vsel %vm433, %v1079, 0
      %1126 = vmatprep.subr.bf16.mxu0 0
      %1127 = vmatpush1.bf16.xpose.msra.mxu0 %v643
      %1128 = vmatprep.subr.bf16.mxu0 0
      %1129 = vmatpush1.bf16.xpose.msra.mxu0 0
      %1130 = vmatprep.subr.bf16.mxu0 0
      %1131 = vmatpush1.bf16.xpose.msra.mxu0 0
      %1132 = vmatprep.subr.bf16.mxu0 0
      %1133 = vmatpush1.bf16.xpose.msra.mxu0 0
      %1134 = vmatprep.subr.bf16.mxu0 0
      %1135 = vmatpush1.bf16.xpose.msra.mxu0 0
      %1136 = vmatprep.subr.bf16.mxu0 0
      %1137 = vmatpush1.bf16.xpose.msra.mxu0 0
      %1138 = vmatprep.subr.bf16.mxu0 0
      %1139 = vmatpush1.bf16.xpose.msra.mxu0 0
      %1140 = vmatprep.subr.bf16.mxu0 0
      %1141 = vmatpush1.bf16.xpose.msra.mxu0 0
      %1142 = vmatprep.subr.bf16.mxu0 0
      %1143 = vmatpush1.bf16.xpose.msra.mxu0 0
      %1144 = vmatprep.subr.bf16.mxu0 0
      %1145 = vmatpush1.bf16.xpose.msra.mxu0 0
      %1146 = vmatprep.subr.bf16.mxu0 0
      %1147 = vmatpush1.bf16.xpose.msra.mxu0 0
      %1148 = vmatprep.subr.bf16.mxu0 0
      %1149 = vmatpush1.bf16.xpose.msra.mxu0 0
      %1150 = vmatprep.subr.bf16.mxu0 0
      %1151 = vmatpush1.bf16.xpose.msra.mxu0 0
      %1152 = vmatprep.subr.bf16.mxu0 0
      %1153 = vmatpush1.bf16.xpose.msra.mxu0 0
      %1154 = vmatprep.subr.bf16.mxu0 0
      %1155 = vmatpush1.bf16.xpose.msra.mxu0 0
      %1156 = vmatprep.subr.bf16.mxu0 0
      %1157 = vmatpush1.bf16.xpose.msra.mxu0 0
      %1158 = vmatprep.mubr.bf16.mxu0 0
      %1159 = vmatmul.mubr.bf16.gmra.mrb[0].mxu0 %v1124
      %v1160 = vpop.f32.mrb[0].mxu0
      %v1161 = vadd.f32 %v637, %v1160
      %v1162 = vpop.f32.mrb[0].mxu0
      %v1163 = vpop.f32.mrb[0].mxu0
      %v1164 = vpop.f32.mrb[0].mxu0
      %1165 = vdwg.mxu0
      %v1166 = vmax.f32 %v1118, 0.0
      %v1167 = vmax.f32 %v1161, 0.0
      %v1168 = vand.u32 2147483647, %v1118
      %v1169 = vand.u32 2147483647, %v1161
      %v1170 = vsub.f32 0.0, %v1168
      %v1171 = vsub.f32 0.0, %v1169
      %v1172 = vmul.f32 %v1170, 1.442695
      %v1173 = vpow.pop %v1172
      %v1174 = vmul.f32 %v1171, 1.442695
      %v1175 = vpow.pop %v1174
      %v1176 = vadd.f32 %v1173, 1.0
      %v1177 = vlog2.pop %v1176
      %v1178 = vmul.f32 %v1177, 0.6931472
      %v1179 = vmul.f32 -0.5, %v1173
      %v1180 = vadd.f32 %v1179, 1.0
      %v1181 = vmul.f32 %v1180, %v1173
      %v1182 = vand.u32 2147483647, %v1173
      %vm1183 = vcmp.lt.f32.partialorder %v1182, 0.0004427343
      %v1184 = vsel %vm1183, %v1181, %v1178
      %v1185 = vadd.f32 %v1175, 1.0
      %v1186 = vlog2.pop %v1185
      %v1187 = vmul.f32 %v1186, 0.6931472
      %v1188 = vmul.f32 -0.5, %v1175
      %v1189 = vadd.f32 %v1188, 1.0
      %v1190 = vmul.f32 %v1189, %v1175
      %v1191 = vand.u32 2147483647, %v1175
      %vm1192 = vcmp.lt.f32.partialorder %v1191, 0.0004427343
      %v1193 = vsel %vm1192, %v1190, %v1187
      %v1194 = vadd.f32 %v1166, %v1184
      %v1195 = vadd.f32 %v1167, %v1193
      %v1196 = vadd.f32 %v1194, 0.001
      %v1197 = vadd.f32 %v1195, 0.001
      %v1198 = vrcp.pop %v1196
      %v1199 = vrcp.pop %v1197
      %v1202 = vrot.slane %v1118, 6
      %v1203 = vrot.slane %v1161, 6
      %v1206 = vsub.f32 %v390, %v1202
      %v1207 = vsub.f32 %v391, %v1202
      %v1208 = vsub.f32 %v392, %v1203
      %v1209 = vsub.f32 %v393, %v1203
      %v1212 = vrot.slane %v1198, 6
      %v1213 = vrot.slane %v1199, 6
      %1214 = vrot.lane.b32.xlu0 %v1212, 120
      %v1215 = vpop.permute.xlu0 %1214
      %1216 = vrot.lane.b32.xlu0 %v1213, 120
      %v1217 = vpop.permute.xlu0 %1216
      %v1220 = vmul.f32 %v1206, %v1215
      %v1221 = vmul.f32 %v1207, %v1215
      %v1222 = vmul.f32 %v1208, %v1217
      %v1223 = vmul.f32 %v1209, %v1217
      %v1224 = vmul.f32 %v1220, -0.5
      %v1225 = vmul.f32 %v1221, -0.5
      %v1226 = vmul.f32 %v1222, -0.5
      %v1227 = vmul.f32 %v1223, -0.5
      %v1228 = vmul.f32 %v1224, %v1220
      %v1229 = vmul.f32 %v1225, %v1221
      %v1230 = vmul.f32 %v1226, %v1222
      %v1231 = vmul.f32 %v1227, %v1223
      %v1232 = vlog2.pop %v1196
      %v1233 = vmul.f32 %v1232, 0.6931472
      %v1234 = vlog2.pop %v1197
      %v1235 = vmul.f32 %v1234, 0.6931472
      %v1238 = vrot.slane %v1233, 6
      %v1239 = vrot.slane %v1235, 6
      %1240 = vrot.lane.b32.xlu0 %v1238, 120
      %v1241 = vpop.permute.xlu0 %1240
      %1242 = vrot.lane.b32.xlu0 %v1239, 120
      %v1243 = vpop.permute.xlu0 %1242
      %v1246 = vsub.f32 %v1228, %v1241
      %v1247 = vsub.f32 %v1229, %v1241
      %v1248 = vsub.f32 %v1230, %v1243
      %v1249 = vsub.f32 %v1231, %v1243
      %v1250 = vsub.f32 %v1246, 0.9189385
      %v1251 = vsub.f32 %v1247, 0.9189385
      %v1252 = vsub.f32 %v1248, 0.9189385
      %v1253 = vsub.f32 %v1249, 0.9189385
      %vm1254 = vcmask 64514
      %v1255 = vsel %vm1254, %v1250, 0.0
      %1256 = vadd.xlane.f32.xlu0 %v1255
      %v1257 = vpop.xlane.xlu0 %1256
      %v1258 = vsel %vm820, %v1251, 0.0
      %1259 = vadd.xlane.f32.xlu0 %v1258
      %v1260 = vpop.xlane.xlu0 %1259
      %v1261 = vsel %vm1254, %v1252, 0.0
      %1262 = vadd.xlane.f32.xlu0 %v1261
      %v1263 = vpop.xlane.xlu0 %1262
      %v1264 = vsel %vm820, %v1253, 0.0
      %1265 = vadd.xlane.f32.xlu0 %v1264
      %v1266 = vpop.xlane.xlu0 %1265
      %vm1271 = vcmask 1045504
      %v1272 = vrot.slane %v1257, 2
      %v1273 = vrot.slane %v1260, 2
      %v1274 = vsel %vm1271, %v1272, %v1273
      %v1275 = vrot.slane %v1263, 2
      %v1276 = vrot.slane %v1266, 2
      %v1277 = vsel %vm1271, %v1275, %v1276
      %v1280 = vsel %vm834, %v1274, 0.0
      %v1281 = vrot.slane %v1280, 4
      %v1282 = vadd.f32 %v1280, %v1281
      %v1283 = vrot.slane %v1282, 2
      %v1284 = vadd.f32 %v1282, %v1283
      %v1285 = vrot.slane %v1284, 1
      %v1286 = vadd.f32 %v1284, %v1285
      %v1287 = vsel %vm834, %v1277, 0.0
      %v1288 = vrot.slane %v1287, 4
      %v1289 = vadd.f32 %v1287, %v1288
      %v1290 = vrot.slane %v1289, 2
      %v1291 = vadd.f32 %v1289, %v1290
      %v1292 = vrot.slane %v1291, 1
      %v1293 = vadd.f32 %v1291, %v1292
      %v1294 = vsub.f32 0.0, %v1286
      %v1295 = vsub.f32 0.0, %v1293
      %v1296 = vmul.f32 %v1294, 0.5
      %v1297 = vmul.f32 %v1295, 0.5
      %v1298 = vadd.f32 %v1063, %v1296
      %v1299 = vadd.f32 %v1064, %v1297
      %s1300 = scalar_lea.vmem %s369, 16
      %v1301 = vld [vmem:[%s1300] sm:$0xff]
      %v1302 = vld [vmem:[%s1300 + $0x8] sm:$0xff]
      %1305 = vrot.lane.b32.xlu0 %v1301, 8
      %v1306 = vpop.permute.xlu0 %1305
      %1307 = vrot.lane.b32.xlu0 %v1302, 8
      %v1308 = vpop.permute.xlu0 %1307
      %v1311 = vmul.f32 %v1196, %v1306
      %v1312 = vmul.f32 %v1197, %v1308
      %1315 = vrot.lane.b32.xlu0 %v1311, 120
      %v1316 = vpop.permute.xlu0 %1315
      %1317 = vrot.lane.b32.xlu0 %v1312, 120
      %v1318 = vpop.permute.xlu0 %1317
      %v1321 = vadd.f32 %v1118, %v1316
      %v1322 = vadd.f32 %v1161, %v1318
      %v1323 = vmax.f32 %v1321, -5.0
      %v1324 = vmax.f32 %v1322, -5.0
      %v1325 = vmin.f32 %v1323, 5.0
      %v1326 = vmin.f32 %v1324, 5.0
      %v1327 = vsel %vm413, %v1325, %v1071
      %v1328 = vsel %vm413, %v1326, %v1073
      %v1329 = vpack.c.bf16 %v1327, %v1327
      %v1330 = vpack.c.bf16 %v1328, %v1328
      %v1332 = vsel %vm433, %v1329, 0
      %1334 = vmatprep.subr.bf16.mxu0 0
      %1335 = vmatpush1.bf16.xpose.msra.mxu0 %v438
      %1336 = vmatprep.subr.bf16.mxu0 0
      %1337 = vmatpush1.bf16.xpose.msra.mxu0 0
      %1338 = vmatprep.subr.bf16.mxu0 0
      %1339 = vmatpush1.bf16.xpose.msra.mxu0 0
      %1340 = vmatprep.subr.bf16.mxu0 0
      %1341 = vmatpush1.bf16.xpose.msra.mxu0 0
      %1342 = vmatprep.subr.bf16.mxu0 0
      %1343 = vmatpush1.bf16.xpose.msra.mxu0 0
      %1344 = vmatprep.subr.bf16.mxu0 0
      %1345 = vmatpush1.bf16.xpose.msra.mxu0 0
      %1346 = vmatprep.subr.bf16.mxu0 0
      %1347 = vmatpush1.bf16.xpose.msra.mxu0 0
      %1348 = vmatprep.subr.bf16.mxu0 0
      %1349 = vmatpush1.bf16.xpose.msra.mxu0 0
      %1350 = vmatprep.subr.bf16.mxu0 0
      %1351 = vmatpush1.bf16.xpose.msra.mxu0 0
      %1352 = vmatprep.subr.bf16.mxu0 0
      %1353 = vmatpush1.bf16.xpose.msra.mxu0 0
      %1354 = vmatprep.subr.bf16.mxu0 0
      %1355 = vmatpush1.bf16.xpose.msra.mxu0 0
      %1356 = vmatprep.subr.bf16.mxu0 0
      %1357 = vmatpush1.bf16.xpose.msra.mxu0 0
      %1358 = vmatprep.subr.bf16.mxu0 0
      %1359 = vmatpush1.bf16.xpose.msra.mxu0 0
      %1360 = vmatprep.subr.bf16.mxu0 0
      %1361 = vmatpush1.bf16.xpose.msra.mxu0 0
      %1362 = vmatprep.subr.bf16.mxu0 0
      %1363 = vmatpush1.bf16.xpose.msra.mxu0 0
      %1364 = vmatprep.subr.bf16.mxu0 0
      %1365 = vmatpush1.bf16.xpose.msra.mxu0 0
      %1366 = vmatprep.mubr.bf16.mxu0 0
      %1367 = vmatmul.mubr.bf16.gmra.mrb[0].mxu0 %v1332
      %v1368 = vpop.f32.mrb[0].mxu0
      %v1369 = vadd.f32 %v424, %v1368
      %v1370 = vpop.f32.mrb[0].mxu0
      %v1371 = vpop.f32.mrb[0].mxu0
      %v1372 = vpop.f32.mrb[0].mxu0
      %1373 = vdwg.mxu0
      %v1375 = vsel %vm433, %v1330, 0
      %1377 = vmatprep.subr.bf16.mxu0 0
      %1378 = vmatpush1.bf16.xpose.msra.mxu0 %v438
      %1379 = vmatprep.subr.bf16.mxu0 0
      %1380 = vmatpush1.bf16.xpose.msra.mxu0 0
      %1381 = vmatprep.subr.bf16.mxu0 0
      %1382 = vmatpush1.bf16.xpose.msra.mxu0 0
      %1383 = vmatprep.subr.bf16.mxu0 0
      %1384 = vmatpush1.bf16.xpose.msra.mxu0 0
      %1385 = vmatprep.subr.bf16.mxu0 0
      %1386 = vmatpush1.bf16.xpose.msra.mxu0 0
      %1387 = vmatprep.subr.bf16.mxu0 0
      %1388 = vmatpush1.bf16.xpose.msra.mxu0 0
      %1389 = vmatprep.subr.bf16.mxu0 0
      %1390 = vmatpush1.bf16.xpose.msra.mxu0 0
      %1391 = vmatprep.subr.bf16.mxu0 0
      %1392 = vmatpush1.bf16.xpose.msra.mxu0 0
      %1393 = vmatprep.subr.bf16.mxu0 0
      %1394 = vmatpush1.bf16.xpose.msra.mxu0 0
      %1395 = vmatprep.subr.bf16.mxu0 0
      %1396 = vmatpush1.bf16.xpose.msra.mxu0 0
      %1397 = vmatprep.subr.bf16.mxu0 0
      %1398 = vmatpush1.bf16.xpose.msra.mxu0 0
      %1399 = vmatprep.subr.bf16.mxu0 0
      %1400 = vmatpush1.bf16.xpose.msra.mxu0 0
      %1401 = vmatprep.subr.bf16.mxu0 0
      %1402 = vmatpush1.bf16.xpose.msra.mxu0 0
      %1403 = vmatprep.subr.bf16.mxu0 0
      %1404 = vmatpush1.bf16.xpose.msra.mxu0 0
      %1405 = vmatprep.subr.bf16.mxu0 0
      %1406 = vmatpush1.bf16.xpose.msra.mxu0 0
      %1407 = vmatprep.subr.bf16.mxu0 0
      %1408 = vmatpush1.bf16.xpose.msra.mxu0 0
      %1409 = vmatprep.mubr.bf16.mxu0 0
      %1410 = vmatmul.mubr.bf16.gmra.mrb[0].mxu0 %v1375
      %v1411 = vpop.f32.mrb[0].mxu0
      %v1412 = vadd.f32 %v424, %v1411
      %v1413 = vpop.f32.mrb[0].mxu0
      %v1414 = vpop.f32.mrb[0].mxu0
      %v1415 = vpop.f32.mrb[0].mxu0
      %1416 = vdwg.mxu0
      %v1417 = vmax.f32 %v1369, 0.0
      %v1418 = vmax.f32 %v1412, 0.0
      %v1419 = vand.u32 2147483647, %v1369
      %v1420 = vand.u32 2147483647, %v1412
      %v1421 = vsub.f32 0.0, %v1419
      %v1422 = vsub.f32 0.0, %v1420
      %v1423 = vmul.f32 %v1421, 1.442695
      %v1424 = vpow.pop %v1423
      %v1425 = vmul.f32 %v1422, 1.442695
      %v1426 = vpow.pop %v1425
      %v1427 = vadd.f32 %v1424, 1.0
      %v1428 = vlog2.pop %v1427
      %v1429 = vmul.f32 %v1428, 0.6931472
      %v1430 = vmul.f32 -0.5, %v1424
      %v1431 = vadd.f32 %v1430, 1.0
      %v1432 = vmul.f32 %v1431, %v1424
      %v1433 = vand.u32 2147483647, %v1424
      %vm1434 = vcmp.lt.f32.partialorder %v1433, 0.0004427343
      %v1435 = vsel %vm1434, %v1432, %v1429
      %v1436 = vadd.f32 %v1426, 1.0
      %v1437 = vlog2.pop %v1436
      %v1438 = vmul.f32 %v1437, 0.6931472
      %v1439 = vmul.f32 -0.5, %v1426
      %v1440 = vadd.f32 %v1439, 1.0
      %v1441 = vmul.f32 %v1440, %v1426
      %v1442 = vand.u32 2147483647, %v1426
      %vm1443 = vcmp.lt.f32.partialorder %v1442, 0.0004427343
      %v1444 = vsel %vm1443, %v1441, %v1438
      %v1445 = vadd.f32 %v1417, %v1435
      %v1446 = vadd.f32 %v1418, %v1444
      %v1447 = vadd.f32 %v1445, 0.001
      %v1448 = vadd.f32 %v1446, 0.001
      %s1449 = scalar_lea.vmem %s2, 16
      %v1450 = vld [vmem:[%s1449] sm:$0xff]
      %v1451 = vld [vmem:[%s1449 + $0x8] sm:$0xff]
      %v1452 = vrcp.pop %v1447
      %v1453 = vrcp.pop %v1448
      %v1454 = vsub.f32 %v1450, %v1369
      %v1455 = vsub.f32 %v1451, %v1412
      %1458 = vrot.lane.b32.xlu0 %v1452, 127
      %v1459 = vpop.permute.xlu0 %1458
      %1460 = vrot.lane.b32.xlu0 %v1453, 127
      %v1461 = vpop.permute.xlu0 %1460
      %v1464 = vmul.f32 %v1454, %v1459
      %v1465 = vmul.f32 %v1455, %v1461
      %v1466 = vmul.f32 %v1464, -0.5
      %v1467 = vmul.f32 %v1465, -0.5
      %v1468 = vmul.f32 %v1466, %v1464
      %v1469 = vmul.f32 %v1467, %v1465
      %v1470 = vlog2.pop %v1447
      %v1471 = vmul.f32 %v1470, 0.6931472
      %v1472 = vlog2.pop %v1448
      %v1473 = vmul.f32 %v1472, 0.6931472
      %1476 = vrot.lane.b32.xlu0 %v1471, 127
      %v1477 = vpop.permute.xlu0 %1476
      %1478 = vrot.lane.b32.xlu0 %v1473, 127
      %v1479 = vpop.permute.xlu0 %1478
      %v1482 = vsub.f32 %v1468, %v1477
      %v1483 = vsub.f32 %v1469, %v1479
      %v1484 = vsub.f32 %v1482, 0.9189385
      %v1485 = vsub.f32 %v1483, 0.9189385
      %v1486 = vadd.f32 %v1484, 0.0
      %v1487 = vadd.f32 %v1485, 0.0
      %vm1488 = vcmask 6144
      %v1489 = vsel %vm1488, %v1486, 0.0
      %v1490 = vrot.slane %v1489, 4
      %v1491 = vadd.f32 %v1489, %v1490
      %v1492 = vrot.slane %v1491, 2
      %v1493 = vadd.f32 %v1491, %v1492
      %v1494 = vrot.slane %v1493, 1
      %v1495 = vadd.f32 %v1493, %v1494
      %v1496 = vsel %vm1488, %v1487, 0.0
      %v1497 = vrot.slane %v1496, 4
      %v1498 = vadd.f32 %v1496, %v1497
      %v1499 = vrot.slane %v1498, 2
      %v1500 = vadd.f32 %v1498, %v1499
      %v1501 = vrot.slane %v1500, 1
      %v1502 = vadd.f32 %v1500, %v1501
      %v1503 = vsub.f32 0.0, %v1495
      %v1504 = vsub.f32 0.0, %v1502
      %v1505 = vmul.f32 %v1503, 0.25
      %v1506 = vmul.f32 %v1504, 0.25
      %v1507 = vadd.f32 %v1298, %v1505
      %v1508 = vadd.f32 %v1299, %v1506
      %vm1511 = vcmask 1041409
      %v1512 = vsel %vm1511, %v1508, %v1507
      %vm1514 = vcmask 1024
      %1515 = vst.msk [vmem:[%s388] sm:$0x3] %vm1514, %v1512
      %p1516 = scmp.lt.s32.totalorder %s19, 3
      %s1517 = scalar_select %p1516, %s19, 3
      %s1518 = smul.addr %s1517, 2
      %s1519 = scalar_lea.vmem %s8, %s1518
      // Predicated region
      $region53: #{mdp_loss_forward.1} parent=51 // pred_check
        %p1520 = pneg %p235
      $region54: #{mdp_loss_forward.1} parent=51 // pred_check_branch
        %1522 = sbr.rel (%p1520) target = $region56
      $region55: #{mdp_loss_forward.1} parent=51 // pred_region
        _
      $region56: #{mdp_loss_forward.1} parent=51 // pred_fallthru
        _
    $region52: #{mdp_loss_forward.1} parent=5 // pred_fallthru
      _
    %p1523 = scmp.le.s32.totalorder 2, %s14
    // Predicated region
    $region57: #{mdp_loss_forward.1} parent=5 // pred_check
      %p1524 = pneg %p1523
    $region58: #{mdp_loss_forward.1} parent=5 // pred_check_branch
      %1526 = sbr.rel (%p1524) target = $region60
    $region59: #{mdp_loss_forward.1} parent=5 // pred_region
      %s1527 = ssub.s32 %s14, 2
      // Predicated region
      $region61: #{mdp_loss_forward.1} parent=59 // pred_check
        %p1528 = pneg %p241
      $region62: #{mdp_loss_forward.1} parent=59 // pred_check_branch
        %1530 = sbr.rel (%p1528) target = $region64
      $region63: #{mdp_loss_forward.1} parent=59 // pred_region
        %p1531 = scmp.lt.s32.totalorder %s20, 3
        %s1532 = scalar_select %p1531, %s20, 3
        %s1533 = smul.addr %s1532, 2
        %s1534 = scalar_lea.vmem %s8, %s1533
      $region64: #{mdp_loss_forward.1} parent=59 // pred_fallthru
        _
    $region60: #{mdp_loss_forward.1} parent=5 // pred_fallthru
      _
  $region6: #{mdp_loss_forward.1} parent=0 // loop_footer
    %s18 = sadd.s32 1, %s14
  $region7: #{mdp_loss_forward.1} parent=0 // loop_footer_branch
    %13 = sbr.rel target = $region3
  $region8: #{mdp_loss_forward.1} parent=0 // loop_exit
    _

</llo_original>
